<compile_context>
chip_gen: v7x
topology: tpu7x:2x2x1
jax: 0.10.0
libtpu: 0.0.40
codegen_flags: <defaults>
</compile_context>

<pallas_src>
import math
import functools

import jax
import jax.numpy as jnp
from jax.experimental import pallas as pl
from jax.experimental.pallas import tpu as pltpu


def _fused_kernel(n_inputs, compute_dtype, *refs):
    # refs = (x_0..x_{N-1}, R_0..R_{N-1}, out)
    x_refs = refs[:n_inputs]
    r_refs = refs[n_inputs:2 * n_inputs]
    o_ref = refs[2 * n_inputs]

    def mm(i):
        x = x_refs[i][...]
        r = r_refs[i][...]
        if compute_dtype is not None:
            # Opt-in reduced-precision MXU path; VPU cast hides under the DMA,
            # operands stay full precision in HBM.
            x = x.astype(compute_dtype)
            r = r.astype(compute_dtype)
        return jnp.dot(x, r, preferred_element_type=jnp.float32)

    acc = mm(0)                               # scale already folded into R_0
    for i in range(1, n_inputs):
        acc = acc * mm(i)                     # elementwise product in f32 (VPU)
    o_ref[...] = acc.astype(o_ref.dtype)


def _vmem_capacity_bytes():
    try:
        return int(pltpu.get_tpu_info().vmem_capacity_bytes)
    except Exception:
        return 64 << 20                       # conservative (v7x per-TC VMEM)


def _pick_tiles(B, output_dim, sum_d, x_isz, r_isz, out_isz, budget):
    def footprint(tb, tn):
        # Pallas double-buffers each operand window.
        return 2 * (tb * sum_d * x_isz + sum_d * tn * r_isz + tb * tn * out_isz)

    tb_cands = sorted({B} | {c for c in (2048, 1024, 512, 256, 128, 64, 32, 16, 8)
                             if c < B}, reverse=True)
    tn_cands = [output_dim]
    c = (output_dim // 128) * 128
    while c >= 128:
        if c < output_dim:
            tn_cands.append(c)                # lane-dense 128-multiples, descending
        c //= 2

    tb_ = B if B < 8 else 8                   # last-resort fallback
    tn_ = output_dim if output_dim < 128 else 128
    done = False
    for tn in tn_cands:                       # prefer full width (R resident,
        for tb in tb_cands:                   # unmasked stores), then largest batch
            if footprint(tb, tn) <= budget:
                tb_, tn_ = tb, tn
                done = True
                break
        if done:
            break

    # Keep >= 2 grid steps along a "parallel" axis so both v7x TensorCores get
    # work; costs only ~0.35 us of step overhead on single-TC v5e/v6e.
    if pl.cdiv(B, tb_) * pl.cdiv(output_dim, tn_) == 1:
        if B >= 16:
            tb_ = max(8, (((B + 1) // 2) + 7) // 8 * 8)
        elif output_dim >= 256 and (output_dim // 2) % 128 == 0:
            tn_ = output_dim // 2

    return tb_, tn_, footprint(tb_, tn_)


def make_random_layer(input_dim_list, output_dim, *,
                      param_dtype=jnp.float32,   # dtype of R at rest in HBM
                      compute_dtype=None,        # opt-in MXU input dtype (e.g. bf16)
                      out_dtype=jnp.float32):
    """Returns (prepare_params, apply).

    prepare_params(random_matrices): one-time prep — fold 1/output_dim**(1/N)
        into R_0 and cast to `param_dtype`.
    apply(input_list, prepared_matrices): fused Pallas forward.
    """
    n_inputs = len(input_dim_list)
    assert n_inputs >= 1
    input_dim_list = [int(d) for d in input_dim_list]
    output_dim = int(output_dim)
    scale = 1.0 / math.pow(float(output_dim), 1.0 / n_inputs)
    sum_d = sum(input_dim_list)

    def prepare_params(random_matrices):
        assert len(random_matrices) == n_inputs
        prepared = []
        for i, r in enumerate(random_matrices):
            r = r.astype(jnp.float32)
            if i == 0:
                r = r * scale                  # fold scale once, not per grid step
            prepared.append(r.astype(param_dtype))
        return prepared

    kernel = functools.partial(_fused_kernel, n_inputs, compute_dtype)

    def apply(input_list, prepared_matrices):
        assert len(input_list) == n_inputs and len(prepared_matrices) == n_inputs
        B = int(input_list[0].shape[0])

        x_isz = jnp.dtype(input_list[0].dtype).itemsize
        r_isz = jnp.dtype(param_dtype).itemsize
        out_isz = jnp.dtype(out_dtype).itemsize

        budget = max(16 << 20, _vmem_capacity_bytes() // 2)
        tb_, tn_, fp = _pick_tiles(B, output_dim, sum_d,
                                   x_isz, r_isz, out_isz, budget)

        # Grid order (nj, bi): R block index constant across the inner bi loop
        # -> fetched once per nj and reused for every batch tile.
        grid = (pl.cdiv(output_dim, tn_), pl.cdiv(B, tb_))

        x_specs = [pl.BlockSpec((tb_, d), lambda nj, bi: (bi, 0))
                   for d in input_dim_list]
        r_specs = [pl.BlockSpec((d, tn_), lambda nj, bi: (0, nj))
                   for d in input_dim_list]
        out_spec = pl.BlockSpec((tb_, tn_), lambda nj, bi: (bi, nj))

        flops = 2 * B * output_dim * sum_d + (n_inputs - 1) * B * output_dim
        bytes_accessed = (B * sum_d * x_isz + sum_d * output_dim * r_isz
                          + B * output_dim * out_isz)

        return pl.pallas_call(
            kernel,
            out_shape=jax.ShapeDtypeStruct((B, output_dim), out_dtype),
            grid_spec=pltpu.PrefetchScalarGridSpec(
                num_scalar_prefetch=0,
                grid=grid,
                in_specs=x_specs + r_specs,
                out_specs=out_spec,
            ),
            compiler_params=pltpu.CompilerParams(
                dimension_semantics=("parallel", "parallel"),
                vmem_limit_bytes=max(int(fp) + (4 << 20), 16 << 20),
            ),
            cost_estimate=pl.CostEstimate(
                flops=flops, transcendentals=0, bytes_accessed=bytes_accessed),
        )(*input_list, *prepared_matrices)

    return prepare_params, apply


if __name__ == "__main__":
    # Module-consistent small shapes: two feature tensors (B, d_i), output_dim
    # is the module default (1024). B=128 -> 2 batch tiles (both v7x TCs busy).
    B = 128
    input_dim_list = [64, 32]
    output_dim = 1024

    key = jax.random.PRNGKey(0)
    keys = jax.random.split(key, 2 * len(input_dim_list))

    # The torch.randn random matrices, materialized deterministically in f32.
    random_matrices = [
        jax.random.normal(keys[i], (input_dim_list[i], output_dim), dtype=jnp.float32)
        for i in range(len(input_dim_list))
    ]
    inputs = [
        jax.random.normal(keys[len(input_dim_list) + i], (B, input_dim_list[i]),
                          dtype=jnp.float32)
        for i in range(len(input_dim_list))
    ]

    prepare_params, random_layer = make_random_layer(input_dim_list, output_dim)
    prepped = prepare_params(random_matrices)            # one-time param prep
    out = jax.block_until_ready(random_layer(inputs, prepped))

    # PyTorch-equivalent f32 reference (scale applied after the matmul).
    ys = [jnp.dot(inputs[i], random_matrices[i], precision=jax.lax.Precision.HIGHEST)
          for i in range(len(inputs))]
    ref = ys[0] / math.pow(float(output_dim), 1.0 / len(ys))
    for y in ys[1:]:
        ref = ref * y

    assert out.shape == (B, output_dim) and out.dtype == jnp.float32
    assert jnp.allclose(out, ref, atol=1e-1, rtol=1e-1)
    rel_err = jnp.linalg.norm(out - ref) / jnp.linalg.norm(ref)
    assert rel_err < 3e-2

    print("KERNEL_OK")
</pallas_src>

<mosaic_0001>
module attributes {stable_mosaic.version = 11 : i64} {
  func.func @_fused_kernel(%arg0: i32, %arg1: i32, %arg2: memref<64x64xf32, #tpu.memory_space<vmem>>, %arg3: memref<64x32xf32, #tpu.memory_space<vmem>>, %arg4: memref<64x1024xf32, #tpu.memory_space<vmem>>, %arg5: memref<32x1024xf32, #tpu.memory_space<vmem>>, %arg6: memref<64x1024xf32, #tpu.memory_space<vmem>>) attributes {dimension_semantics = [#tpu.dimension_semantics<parallel>, #tpu.dimension_semantics<parallel>], iteration_bounds = array<i64: 1, 2>, scalar_prefetch = 0 : i64, scratch_operands = 0 : i64, tpu.core_type = #tpu.core_type<tc>, window_params = [{transform_indices = @transform_0, window_bounds = array<i64: 64, 64>}, {transform_indices = @transform_1, window_bounds = array<i64: 64, 32>}, {transform_indices = @transform_2, window_bounds = array<i64: 64, 1024>}, {transform_indices = @transform_3, window_bounds = array<i64: 32, 1024>}, {transform_indices = @transform_4, window_bounds = array<i64: 64, 1024>}]} {
    %c0 = arith.constant 0 : index
    %c0_0 = arith.constant 0 : index
    %0 = vector.load %arg2[%c0, %c0_0] : memref<64x64xf32, #tpu.memory_space<vmem>>, vector<64x64xf32>
    %c0_1 = arith.constant 0 : index
    %c0_2 = arith.constant 0 : index
    %1 = vector.load %arg4[%c0_1, %c0_2] : memref<64x1024xf32, #tpu.memory_space<vmem>>, vector<64x1024xf32>
    %cst = arith.constant dense<0.000000e+00> : vector<64x1024xf32>
    %2 = tpu.matmul %0, %1, %cst {dimension_numbers = #tpu.dot_dimension_numbers<[1], [0], [0], [1], [0, 0, 1, 1], [], []>} : vector<64x64xf32>, vector<64x1024xf32>, vector<64x1024xf32> -> vector<64x1024xf32>
    %c0_3 = arith.constant 0 : index
    %c0_4 = arith.constant 0 : index
    %3 = vector.load %arg3[%c0_3, %c0_4] : memref<64x32xf32, #tpu.memory_space<vmem>>, vector<64x32xf32>
    %c0_5 = arith.constant 0 : index
    %c0_6 = arith.constant 0 : index
    %4 = vector.load %arg5[%c0_5, %c0_6] : memref<32x1024xf32, #tpu.memory_space<vmem>>, vector<32x1024xf32>
    %cst_7 = arith.constant dense<0.000000e+00> : vector<64x1024xf32>
    %5 = tpu.matmul %3, %4, %cst_7 {dimension_numbers = #tpu.dot_dimension_numbers<[1], [0], [0], [1], [0, 0, 1, 1], [], []>} : vector<64x32xf32>, vector<32x1024xf32>, vector<64x1024xf32> -> vector<64x1024xf32>
    %6 = arith.mulf %2, %5 : vector<64x1024xf32>
    %c0_8 = arith.constant 0 : index
    %c0_9 = arith.constant 0 : index
    %7 = vector.load %arg6[%c0_8, %c0_9] : memref<64x1024xf32, #tpu.memory_space<vmem>>, vector<64x1024xf32>
    tpu.vector_store %arg6[%c0_8, %c0_9], %6 {strides = array<i32>} : memref<64x1024xf32, #tpu.memory_space<vmem>>, vector<64x1024xf32>,
    return
  }
  func.func @transform_0(%arg0: i32, %arg1: i32) -> (i32, i32) {
    %c0_i32 = arith.constant 0 : i32
    %c0_i32_0 = arith.constant 0 : i32
    return %arg1, %c0_i32 : i32, i32
  }
  func.func @transform_1(%arg0: i32, %arg1: i32) -> (i32, i32) {
    %c0_i32 = arith.constant 0 : i32
    %c0_i32_0 = arith.constant 0 : i32
    return %arg1, %c0_i32 : i32, i32
  }
  func.func @transform_2(%arg0: i32, %arg1: i32) -> (i32, i32) {
    %c0_i32 = arith.constant 0 : i32
    %c0_i32_0 = arith.constant 0 : i32
    return %c0_i32, %arg0 : i32, i32
  }
  func.func @transform_3(%arg0: i32, %arg1: i32) -> (i32, i32) {
    %c0_i32 = arith.constant 0 : i32
    %c0_i32_0 = arith.constant 0 : i32
    return %c0_i32, %arg0 : i32, i32
  }
  func.func @transform_4(%arg0: i32, %arg1: i32) -> (i32, i32) {
    %c0_i32 = arith.constant 0 : i32
    return %arg1, %arg0 : i32, i32
  }
}

</mosaic_0001>

<llo_original>
// kernel: tpu_custom_call.1
$region0: #{tpu_custom_call.1}
  #allocation0 [shape = 'u32[]', space=smem, size = 0x4, offset = 0x4, fixed_abs, tag = 'smem constant byte address 0x4 - core index']
  #allocation1 [shape = 'u32[144,128]{1,0:T(1,128)}', space=vmem, size = 0x12000, scoped, tag = 'internal scratch']
  %s0 = inlined_call_operand.vmem [shape: f32[128,64], index: 0, kind: input, shape index: {}]
  %s1 = inlined_call_operand.vmem [shape: f32[128,32], index: 1, kind: input, shape index: {}]
  %s2 = inlined_call_operand.hbm [shape: f32[64,1024], index: 2, kind: input, shape index: {}]
  %s3 = inlined_call_operand.vmem [shape: f32[32,1024], index: 3, kind: input, shape index: {}]
  %s4 = inlined_call_operand.hbm [shape: f32[128,1024], index: 4, kind: output, shape index: {}]
  %s5 = sld [smem:[#allocation0]]
  $region53: #{tpu_custom_call.1} parent=0
    _
  %s7 = ssub.s32 1, %s5
  %s8 = scalar_select 0, %s7, %s5
  $region1: #{tpu_custom_call.1} parent=0
    #allocation2 [shape = 'u8[262144]{0}', space=vmem, size = 0x40000, scoped, tag = 'input window, operand 2, single buffered']
    #allocation3 [shape = 's32[2]{0}', space=sflag, size = 0x8, scoped, tag = 'scoped memory for tpu_custom_call.1']
    #allocation4 [shape = 's32[2]{0}', space=sflag, size = 0x8, scoped, tag = 'scoped memory for tpu_custom_call.1']
    #allocation5 [shape = 'u8[524288]{0}', space=vmem, size = 0x80000, scoped, tag = 'output window, operand 0']
    %9 = vsyncpa [#allocation3], 0
    %10 = vsyncpa [#allocation4], 0
    %s11 = scalar_lea.sflag [#allocation4], 1
    %12 = vsyncpa %s11, 0
    loop: start=0, step=1, limit=4
    $region2: #{tpu_custom_call.1} parent=1 // loop_pre_header
      _
    $region3: #{tpu_custom_call.1} parent=1 // loop_header
      %s14 = sphi 0, %s18
      %p15 = scmp.ge.s32.totalorder %s14, 4
      %s21 = sphi 0, %s33
      %s22 = sphi 0, %s29
      %s23 = sphi 0, %s21
      %s24 = sphi 0, %s22
      %s25 = sphi 0, %s23
      %s26 = sphi 0, %s24
      %s36 = sphi 0, %s38
      %s39 = sphi 0, %s36
      %s40 = sphi 0, %s39
      %s56 = sphi 0, %s40
      %s62 = sphi 0, %s64
      %s65 = sphi 0, %s62
      %s66 = sphi 0, %s65
      %s82 = sphi 0, %s66
      %s88 = sphi 0, %s90
      %s91 = sphi 0, %s88
      %s92 = sphi 0, %s91
      %s108 = sphi 0, %s92
      %s114 = sphi 0, %s116
      %s117 = sphi 0, %s114
      %s118 = sphi 0, %s117
      %s134 = sphi 0, %s118
      %s142 = sphi 0, %s144
      %s145 = sphi 0, %s142
      %s146 = sphi 0, %s145
      %s162 = sphi 0, %s146
    $region4: #{tpu_custom_call.1} parent=1 // loop_header_branch
      %17 = sbr.rel (%p15) target = $region8
    $region5: #{tpu_custom_call.1} parent=1 // loop_body
      %s19 = ssub.s32 %s14, 1
      %s20 = ssub.s32 %s14, 2
      %s27 = sadd.s32 1, %s22
      %p28 = scmp.ge.s32.totalorder %s27, 2
      %s29 = scalar_select %p28, 0, %s27
      %s30 = sadd.s32 1, %s21
      %s31 = scalar_select %p28, %s30, %s21
      %p32 = scmp.ge.s32.totalorder %s31, 1
      %s33 = scalar_select %p32, 0, %s31
      %s34 = ssub.s32 %s22, %s29
      %p35 = scmp.eq.s32.totalorder %s34, 0
      %s37 = sadd.s32 %s36, 1
      %s38 = scalar_select %p35, %s36, %s37
      %p41 = pneg %p35
      %p42 = scmp.eq.s32.totalorder %s14, 1
      %p43 = por %p41, %p42
      %p44 = scmp.ne.s32.totalorder %s36, %s39
      %p45 = scmp.eq.s32.totalorder %s14, 0
      %p46 = por %p44, %p45
      %p47 = scmp.ne.s32.totalorder %s36, %s39
      %p48 = scmp.eq.s32.totalorder %s19, 1
      %p49 = por %p47, %p48
      %p50 = scmp.ne.s32.totalorder %s39, %s40
      %p51 = scmp.eq.s32.totalorder %s19, 0
      %p52 = por %p50, %p51
      %p53 = scmp.ne.s32.totalorder %s39, %s40
      %p54 = scmp.eq.s32.totalorder %s20, 1
      %p55 = por %p53, %p54
      %p57 = scmp.ne.s32.totalorder %s40, %s56
      %p58 = scmp.eq.s32.totalorder %s20, 0
      %p59 = por %p57, %p58
      %s60 = ssub.s32 %s22, %s29
      %p61 = scmp.eq.s32.totalorder %s60, 0
      %s63 = sadd.s32 %s62, 1
      %s64 = scalar_select %p61, %s62, %s63
      %p67 = pneg %p61
      %p68 = scmp.eq.s32.totalorder %s14, 1
      %p69 = por %p67, %p68
      %p70 = scmp.ne.s32.totalorder %s62, %s65
      %p71 = scmp.eq.s32.totalorder %s14, 0
      %p72 = por %p70, %p71
      %p73 = scmp.ne.s32.totalorder %s62, %s65
      %p74 = scmp.eq.s32.totalorder %s19, 1
      %p75 = por %p73, %p74
      %p76 = scmp.ne.s32.totalorder %s65, %s66
      %p77 = scmp.eq.s32.totalorder %s19, 0
      %p78 = por %p76, %p77
      %p79 = scmp.ne.s32.totalorder %s65, %s66
      %p80 = scmp.eq.s32.totalorder %s20, 1
      %p81 = por %p79, %p80
      %p83 = scmp.ne.s32.totalorder %s66, %s82
      %p84 = scmp.eq.s32.totalorder %s20, 0
      %p85 = por %p83, %p84
      %s86 = ssub.s32 %s21, %s33
      %p87 = scmp.eq.s32.totalorder %s86, 0
      %s89 = sadd.s32 %s88, 1
      %s90 = scalar_select %p87, %s88, %s89
      %p93 = pneg %p87
      %p94 = scmp.eq.s32.totalorder %s14, 1
      %p95 = por %p93, %p94
      %p96 = scmp.ne.s32.totalorder %s88, %s91
      %p97 = scmp.eq.s32.totalorder %s14, 0
      %p98 = por %p96, %p97
      %p99 = scmp.ne.s32.totalorder %s88, %s91
      %p100 = scmp.eq.s32.totalorder %s19, 1
      %p101 = por %p99, %p100
      %p102 = scmp.ne.s32.totalorder %s91, %s92
      %p103 = scmp.eq.s32.totalorder %s19, 0
      %p104 = por %p102, %p103
      %p105 = scmp.ne.s32.totalorder %s91, %s92
      %p106 = scmp.eq.s32.totalorder %s20, 1
      %p107 = por %p105, %p106
      %p109 = scmp.ne.s32.totalorder %s92, %s108
      %p110 = scmp.eq.s32.totalorder %s20, 0
      %p111 = por %p109, %p110
      %s112 = ssub.s32 %s21, %s33
      %p113 = scmp.eq.s32.totalorder %s112, 0
      %s115 = sadd.s32 %s114, 1
      %s116 = scalar_select %p113, %s114, %s115
      %p119 = pneg %p113
      %p120 = scmp.eq.s32.totalorder %s14, 1
      %p121 = por %p119, %p120
      %p122 = scmp.ne.s32.totalorder %s114, %s117
      %p123 = scmp.eq.s32.totalorder %s14, 0
      %p124 = por %p122, %p123
      %p125 = scmp.ne.s32.totalorder %s114, %s117
      %p126 = scmp.eq.s32.totalorder %s19, 1
      %p127 = por %p125, %p126
      %p128 = scmp.ne.s32.totalorder %s117, %s118
      %p129 = scmp.eq.s32.totalorder %s19, 0
      %p130 = por %p128, %p129
      %p131 = scmp.ne.s32.totalorder %s117, %s118
      %p132 = scmp.eq.s32.totalorder %s20, 1
      %p133 = por %p131, %p132
      %p135 = scmp.ne.s32.totalorder %s118, %s134
      %p136 = scmp.eq.s32.totalorder %s20, 0
      %p137 = por %p135, %p136
      %s138 = ssub.s32 %s22, %s29
      %s139 = ssub.s32 %s21, %s33
      %s140 = sor.u32 %s138, %s139
      %p141 = scmp.eq.s32.totalorder %s140, 0
      %s143 = sadd.s32 %s142, 1
      %s144 = scalar_select %p141, %s142, %s143
      %p147 = pneg %p141
      %p148 = scmp.eq.s32.totalorder %s14, 1
      %p149 = por %p147, %p148
      %p150 = scmp.ne.s32.totalorder %s142, %s145
      %p151 = scmp.eq.s32.totalorder %s14, 0
      %p152 = por %p150, %p151
      %p153 = scmp.ne.s32.totalorder %s142, %s145
      %p154 = scmp.eq.s32.totalorder %s19, 1
      %p155 = por %p153, %p154
      %p156 = scmp.ne.s32.totalorder %s145, %s146
      %p157 = scmp.eq.s32.totalorder %s19, 0
      %p158 = por %p156, %p157
      %p159 = scmp.ne.s32.totalorder %s145, %s146
      %p160 = scmp.eq.s32.totalorder %s20, 1
      %p161 = por %p159, %p160
      %p163 = scmp.ne.s32.totalorder %s146, %s162
      %p164 = scmp.eq.s32.totalorder %s20, 0
      %p165 = por %p163, %p164
      %p166 = scmp.le.s32.totalorder 1, %s14
      %p167 = scmp.lt.s32.totalorder %s14, 3
      %p168 = pnand %p166, %p167
      %p169 = pneg %p168
      // Predicated region
      $region9: #{tpu_custom_call.1} parent=5 // pred_check
        _
      $region10: #{tpu_custom_call.1} parent=5 // pred_check_branch
        %171 = sbr.rel (%p168) target = $region12
      $region11: #{tpu_custom_call.1} parent=5 // pred_region
        %s172 = ssub.s32 %s14, 1
        // Predicated region
        $region13: #{tpu_custom_call.1} parent=11 // pred_check
          %p173 = pneg %p104
        $region14: #{tpu_custom_call.1} parent=11 // pred_check_branch
          %175 = sbr.rel (%p173) target = $region16
        $region15: #{tpu_custom_call.1} parent=11 // pred_region
          %s176 = smul.u32 8, %s23
          %s178 = ssub.s32 8192, 8192
          %179 = vsyncadd [#allocation3], %s178
          %s180 = smul.addr %s176, 128
          %s181 = scalar_lea.hbm %s2, %s180
          %s182 = sshll.u32 [#allocation2], 4
          %s183 = int_to_ptr.vmem [resolvable:$true] %s182
          %188 = dma.hbm_to_vmem [thread:$0]  %s181, 8192, %s183, [#allocation3], 1024, 1024, 64
        $region16: #{tpu_custom_call.1} parent=11 // pred_fallthru
          _
        // Predicated region
        $region17: #{tpu_custom_call.1} parent=11 // pred_check
          %p189 = pneg %p130
        $region18: #{tpu_custom_call.1} parent=11 // pred_check_branch
          %191 = sbr.rel (%p189) target = $region20
        $region19: #{tpu_custom_call.1} parent=11 // pred_region
          %s192 = smul.u32 8, %s23
          %p193 = scmp.lt.s32.totalorder %s192, 7
          %s194 = scalar_select %p193, %s192, 7
          %s195 = smul.addr %s194, 8
          %s196 = scalar_lea.vmem %s3, %s195
          %s197 = smul.u32 8, %s23
        $region20: #{tpu_custom_call.1} parent=11 // pred_fallthru
          _
      $region12: #{tpu_custom_call.1} parent=5 // pred_fallthru
        _
      %p198 = scmp.lt.s32.totalorder %s14, 2
      // Predicated region
      $region21: #{tpu_custom_call.1} parent=5 // pred_check
        %p199 = pneg %p198
      $region22: #{tpu_custom_call.1} parent=5 // pred_check_branch
        %201 = sbr.rel (%p199) target = $region24
      $region23: #{tpu_custom_call.1} parent=5 // pred_region
        // Predicated region
        $region25: #{tpu_custom_call.1} parent=23 // pred_check
          %p202 = pneg %p46
        $region26: #{tpu_custom_call.1} parent=23 // pred_check_branch
          %204 = sbr.rel (%p202) target = $region28
        $region27: #{tpu_custom_call.1} parent=23 // pred_region
          %s205 = smul.u32 8, %s22
          %p206 = scmp.lt.s32.totalorder %s205, 15
          %s207 = scalar_select %p206, %s205, 15
          %s208 = smul.addr %s207, 8
          %s209 = scalar_lea.vmem %s0, %s208
          %s210 = smul.u32 8, %s22
        $region28: #{tpu_custom_call.1} parent=23 // pred_fallthru
          _
        // Predicated region
        $region29: #{tpu_custom_call.1} parent=23 // pred_check
          %p211 = pneg %p72
        $region30: #{tpu_custom_call.1} parent=23 // pred_check_branch
          %213 = sbr.rel (%p211) target = $region32
        $region31: #{tpu_custom_call.1} parent=23 // pred_region
          %s214 = smul.u32 8, %s22
          %p215 = scmp.lt.s32.totalorder %s214, 15
          %s216 = scalar_select %p215, %s214, 15
          %s217 = smul.addr %s216, 8
          %s218 = scalar_lea.vmem %s1, %s217
          %s219 = smul.u32 8, %s22
        $region32: #{tpu_custom_call.1} parent=23 // pred_fallthru
          _
      $region24: #{tpu_custom_call.1} parent=5 // pred_fallthru
        _
      %p220 = scmp.le.s32.totalorder 1, %s14
      %p221 = scmp.lt.s32.totalorder %s14, 3
      %p222 = pnand %p220, %p221
      %p223 = pneg %p222
      // Predicated region
      $region33: #{tpu_custom_call.1} parent=5 // pred_check
        _
      $region34: #{tpu_custom_call.1} parent=5 // pred_check_branch
        %225 = sbr.rel (%p222) target = $region36
      $region35: #{tpu_custom_call.1} parent=5 // pred_region
        %s226 = ssub.s32 %s14, 1
        // Predicated region
        $region37: #{tpu_custom_call.1} parent=35 // pred_check
          %p227 = pneg %p104
        $region38: #{tpu_custom_call.1} parent=35 // pred_check_branch
          %229 = sbr.rel (%p227) target = $region40
        $region39: #{tpu_custom_call.1} parent=35 // pred_region
          %230 = dma.done [#allocation3], 8192
        $region40: #{tpu_custom_call.1} parent=35 // pred_fallthru
          _
        %s231 = smul.u32 8, %s24
        %p232 = scmp.lt.s32.totalorder %s231, 15
        %s233 = scalar_select %p232, %s231, 15
        %s234 = smul.addr %s233, 8
        %s235 = scalar_lea.vmem %s0, %s234
        %p236 = pneg %p52
        %p237 = pneg %p49
        %s238 = smul.u32 8, %s24
        %p239 = scmp.lt.s32.totalorder %s238, 15
        %s240 = scalar_select %p239, %s238, 15
        %s241 = smul.addr %s240, 8
        %s242 = scalar_lea.vmem %s1, %s241
        %p243 = pneg %p78
        %p244 = pneg %p75
        %p245 = pneg %p104
        %p246 = pneg %p101
        %s247 = smul.u32 8, %s23
        %p248 = scmp.lt.s32.totalorder %s247, 7
        %s249 = scalar_select %p248, %s247, 7
        %s250 = smul.addr %s249, 8
        %s251 = scalar_lea.vmem %s3, %s250
        %p252 = pneg %p130
        %p253 = pneg %p127
        %p254 = pneg %p158
        %p255 = pneg %p155
        %s256 = sand.u32 %s145, 1
        %s257 = scalar_lea.sflag [#allocation4], %s256
        %s258 = sand.u32 %s145, 1
        %s259 = smul.addr %s258, 512
        %s260 = scalar_lea.vmem [#allocation5], %s259
        %s261 = smul.u32 8, %s24
        %p262 = scmp.lt.s32.totalorder %s261, 15
        %s263 = scalar_select %p262, %s261, 15
        %s264 = smul.addr %s263, 8
        %s265 = scalar_lea.vmem %s0, %s264
        %s266 = smul.u32 8, %s24
        %s267 = smul.u32 8, %s24
        %p268 = scmp.lt.s32.totalorder %s267, 15
        %s269 = scalar_select %p268, %s267, 15
        %s270 = smul.addr %s269, 8
        %s271 = scalar_lea.vmem %s1, %s270
        %s272 = smul.u32 8, %s24
        %s273 = smul.u32 8, %s23
        %s274 = smul.u32 8, %s23
        %p275 = scmp.lt.s32.totalorder %s274, 7
        %s276 = scalar_select %p275, %s274, 7
        %s277 = smul.addr %s276, 8
        %s278 = scalar_lea.vmem %s3, %s277
        %s279 = smul.u32 8, %s23
        %s280 = smul.u32 8, %s24
        %s281 = smul.u32 8, %s23
        %v282 = vld [vmem:[%s265] sm:$0xff]
        %v283 = vld [vmem:[%s265 + $0x8] sm:$0xff]
        %v284 = vld [vmem:[%s265 + $0x10] sm:$0xff]
        %v285 = vld [vmem:[%s265 + $0x18] sm:$0xff]
        %v286 = vld [vmem:[%s265 + $0x20] sm:$0xff]
        %v287 = vld [vmem:[%s265 + $0x28] sm:$0xff]
        %v288 = vld [vmem:[%s265 + $0x30] sm:$0xff]
        %v289 = vld [vmem:[%s265 + $0x38] sm:$0xff]
        %v290 = vld [vmem:[#allocation2] sm:$0xff]
        %v291 = vld [vmem:[#allocation2 + $0x8] sm:$0xff]
        %v292 = vld [vmem:[#allocation2 + $0x10] sm:$0xff]
        %v293 = vld [vmem:[#allocation2 + $0x18] sm:$0xff]
        %v294 = vld [vmem:[#allocation2 + $0x20] sm:$0xff]
        %v295 = vld [vmem:[#allocation2 + $0x28] sm:$0xff]
        %v296 = vld [vmem:[#allocation2 + $0x30] sm:$0xff]
        %v297 = vld [vmem:[#allocation2 + $0x38] sm:$0xff]
        %v298 = vld [vmem:[#allocation2 + $0x40] sm:$0xff]
        %v299 = vld [vmem:[#allocation2 + $0x48] sm:$0xff]
        %v300 = vld [vmem:[#allocation2 + $0x50] sm:$0xff]
        %v301 = vld [vmem:[#allocation2 + $0x58] sm:$0xff]
        %v302 = vld [vmem:[#allocation2 + $0x60] sm:$0xff]
        %v303 = vld [vmem:[#allocation2 + $0x68] sm:$0xff]
        %v304 = vld [vmem:[#allocation2 + $0x70] sm:$0xff]
        %v305 = vld [vmem:[#allocation2 + $0x78] sm:$0xff]
        %v306 = vld [vmem:[#allocation2 + $0x80] sm:$0xff]
        %v307 = vld [vmem:[#allocation2 + $0x88] sm:$0xff]
        %v308 = vld [vmem:[#allocation2 + $0x90] sm:$0xff]
        %v309 = vld [vmem:[#allocation2 + $0x98] sm:$0xff]
        %v310 = vld [vmem:[#allocation2 + $0xa0] sm:$0xff]
        %v311 = vld [vmem:[#allocation2 + $0xa8] sm:$0xff]
        %v312 = vld [vmem:[#allocation2 + $0xb0] sm:$0xff]
        %v313 = vld [vmem:[#allocation2 + $0xb8] sm:$0xff]
        %v314 = vld [vmem:[#allocation2 + $0xc0] sm:$0xff]
        %v315 = vld [vmem:[#allocation2 + $0xc8] sm:$0xff]
        %v316 = vld [vmem:[#allocation2 + $0xd0] sm:$0xff]
        %v317 = vld [vmem:[#allocation2 + $0xd8] sm:$0xff]
        %v318 = vld [vmem:[#allocation2 + $0xe0] sm:$0xff]
        %v319 = vld [vmem:[#allocation2 + $0xe8] sm:$0xff]
        %v320 = vld [vmem:[#allocation2 + $0xf0] sm:$0xff]
        %v321 = vld [vmem:[#allocation2 + $0xf8] sm:$0xff]
        %v322 = vld [vmem:[#allocation2 + $0x100] sm:$0xff]
        %v323 = vld [vmem:[#allocation2 + $0x108] sm:$0xff]
        %v324 = vld [vmem:[#allocation2 + $0x110] sm:$0xff]
        %v325 = vld [vmem:[#allocation2 + $0x118] sm:$0xff]
        %v326 = vld [vmem:[#allocation2 + $0x120] sm:$0xff]
        %v327 = vld [vmem:[#allocation2 + $0x128] sm:$0xff]
        %v328 = vld [vmem:[#allocation2 + $0x130] sm:$0xff]
        %v329 = vld [vmem:[#allocation2 + $0x138] sm:$0xff]
        %v330 = vld [vmem:[#allocation2 + $0x140] sm:$0xff]
        %v331 = vld [vmem:[#allocation2 + $0x148] sm:$0xff]
        %v332 = vld [vmem:[#allocation2 + $0x150] sm:$0xff]
        %v333 = vld [vmem:[#allocation2 + $0x158] sm:$0xff]
        %v334 = vld [vmem:[#allocation2 + $0x160] sm:$0xff]
        %v335 = vld [vmem:[#allocation2 + $0x168] sm:$0xff]
        %v336 = vld [vmem:[#allocation2 + $0x170] sm:$0xff]
        %v337 = vld [vmem:[#allocation2 + $0x178] sm:$0xff]
        %v338 = vld [vmem:[#allocation2 + $0x180] sm:$0xff]
        %v339 = vld [vmem:[#allocation2 + $0x188] sm:$0xff]
        %v340 = vld [vmem:[#allocation2 + $0x190] sm:$0xff]
        %v341 = vld [vmem:[#allocation2 + $0x198] sm:$0xff]
        %v342 = vld [vmem:[#allocation2 + $0x1a0] sm:$0xff]
        %v343 = vld [vmem:[#allocation2 + $0x1a8] sm:$0xff]
        %v344 = vld [vmem:[#allocation2 + $0x1b0] sm:$0xff]
        %v345 = vld [vmem:[#allocation2 + $0x1b8] sm:$0xff]
        %v346 = vld [vmem:[#allocation2 + $0x1c0] sm:$0xff]
        %v347 = vld [vmem:[#allocation2 + $0x1c8] sm:$0xff]
        %v348 = vld [vmem:[#allocation2 + $0x1d0] sm:$0xff]
        %v349 = vld [vmem:[#allocation2 + $0x1d8] sm:$0xff]
        %v350 = vld [vmem:[#allocation2 + $0x1e0] sm:$0xff]
        %v351 = vld [vmem:[#allocation2 + $0x1e8] sm:$0xff]
        %v352 = vld [vmem:[#allocation2 + $0x1f0] sm:$0xff]
        %v353 = vld [vmem:[#allocation2 + $0x1f8] sm:$0xff]
        %vm354 = vcmask 523264
        %v356 = vsel %vm354, %v282, 0
        %v359 = vsel %vm354, %v283, 0
        %v362 = vsel %vm354, %v284, 0
        %v365 = vsel %vm354, %v285, 0
        %v368 = vsel %vm354, %v286, 0
        %v371 = vsel %vm354, %v287, 0
        %v374 = vsel %vm354, %v288, 0
        %v377 = vsel %vm354, %v289, 0
        %379 = vmatprep.subr.mxu0 %v291
        %380 = vmatpush1.msra.mxu0 %v290
        %381 = vmatprep.subr.mxu0 %v299
        %382 = vmatpush1.msra.mxu0 %v298
        %383 = vmatprep.subr.mxu0 %v307
        %384 = vmatpush1.msra.mxu0 %v306
        %385 = vmatprep.subr.mxu0 %v315
        %386 = vmatpush1.msra.mxu0 %v314
        %387 = vmatprep.subr.mxu0 %v323
        %388 = vmatpush1.msra.mxu0 %v322
        %389 = vmatprep.subr.mxu0 %v331
        %390 = vmatpush1.msra.mxu0 %v330
        %391 = vmatprep.subr.mxu0 %v339
        %392 = vmatpush1.msra.mxu0 %v338
        %393 = vmatprep.subr.mxu0 %v347
        %394 = vmatpush1.msra.mxu0 %v346
        %395 = vmatprep.subr.mxu0 0.0
        %396 = vmatpush1.msra.mxu0 0.0
        %397 = vmatprep.subr.mxu0 0.0
        %398 = vmatpush1.msra.mxu0 0.0
        %399 = vmatprep.subr.mxu0 0.0
        %400 = vmatpush1.msra.mxu0 0.0
        %401 = vmatprep.subr.mxu0 0.0
        %402 = vmatpush1.msra.mxu0 0.0
        %403 = vmatprep.subr.mxu0 0.0
        %404 = vmatpush1.msra.mxu0 0.0
        %405 = vmatprep.subr.mxu0 0.0
        %406 = vmatpush1.msra.mxu0 0.0
        %407 = vmatprep.subr.mxu0 0.0
        %408 = vmatpush1.msra.mxu0 0.0
        %409 = vmatprep.subr.mxu0 0.0
        %410 = vmatpush1.msra.mxu0 0.0
        %411 = vmatprep.subr.mxu0 0.0
        %412 = vmatpush1.msra.mxu0 0.0
        %413 = vmatprep.subr.mxu0 0.0
        %414 = vmatpush1.msra.mxu0 0.0
        %415 = vmatprep.subr.mxu0 0.0
        %416 = vmatpush1.msra.mxu0 0.0
        %417 = vmatprep.subr.mxu0 0.0
        %418 = vmatpush1.msra.mxu0 0.0
        %419 = vmatprep.subr.mxu0 0.0
        %420 = vmatpush1.msra.mxu0 0.0
        %421 = vmatprep.subr.mxu0 0.0
        %422 = vmatpush1.msra.mxu0 0.0
        %423 = vmatprep.subr.mxu0 0.0
        %424 = vmatpush1.msra.mxu0 0.0
        %425 = vmatprep.subr.mxu0 0.0
        %426 = vmatpush1.msra.mxu0 0.0
        %427 = vmatprep.subr.mxu0 0.0
        %428 = vmatpush1.msra.mxu0 0.0
        %429 = vmatprep.subr.mxu0 0.0
        %430 = vmatpush1.msra.mxu0 0.0
        %431 = vmatprep.subr.mxu0 0.0
        %432 = vmatpush1.msra.mxu0 0.0
        %433 = vmatprep.subr.mxu0 0.0
        %434 = vmatpush1.msra.mxu0 0.0
        %435 = vmatprep.subr.mxu0 0.0
        %436 = vmatpush1.msra.mxu0 0.0
        %437 = vmatprep.subr.mxu0 0.0
        %438 = vmatpush1.msra.mxu0 0.0
        %439 = vmatprep.subr.mxu0 0.0
        %440 = vmatpush1.msra.mxu0 0.0
        %441 = vmatprep.subr.mxu0 0.0
        %442 = vmatpush1.msra.mxu0 0.0
        %443 = vmatprep.mubr.f32.mxu0 0.0
        %444 = vmatmul.mubr.f32.gmra.mrb[0].mxu0 %v356
        %v445 = vpop.f32.mrb[0].mxu0
        %v446 = vadd.f32 0.0, %v445
        %v447 = vpop.f32.mrb[0].mxu0
        %v448 = vadd.f32 0.0, %v447
        %449 = vmatprep.mubr.f32.mxu0 0.0
        %450 = vmatmul.mubr.f32.gmra.mrb[0].mxu0 %v359
        %v451 = vpop.f32.mrb[0].mxu0
        %v452 = vadd.f32 0.0, %v451
        %v453 = vpop.f32.mrb[0].mxu0
        %v454 = vadd.f32 0.0, %v453
        %455 = vmatprep.mubr.f32.mxu0 0.0
        %456 = vmatmul.mubr.f32.gmra.mrb[0].mxu0 %v362
        %v457 = vpop.f32.mrb[0].mxu0
        %v458 = vadd.f32 0.0, %v457
        %v459 = vpop.f32.mrb[0].mxu0
        %v460 = vadd.f32 0.0, %v459
        %461 = vmatprep.mubr.f32.mxu0 0.0
        %462 = vmatmul.mubr.f32.gmra.mrb[0].mxu0 %v365
        %v463 = vpop.f32.mrb[0].mxu0
        %v464 = vadd.f32 0.0, %v463
        %v465 = vpop.f32.mrb[0].mxu0
        %v466 = vadd.f32 0.0, %v465
        %467 = vmatprep.mubr.f32.mxu0 0.0
        %468 = vmatmul.mubr.f32.gmra.mrb[0].mxu0 %v368
        %v469 = vpop.f32.mrb[0].mxu0
        %v470 = vadd.f32 0.0, %v469
        %v471 = vpop.f32.mrb[0].mxu0
        %v472 = vadd.f32 0.0, %v471
        %473 = vmatprep.mubr.f32.mxu0 0.0
        %474 = vmatmul.mubr.f32.gmra.mrb[0].mxu0 %v371
        %v475 = vpop.f32.mrb[0].mxu0
        %v476 = vadd.f32 0.0, %v475
        %v477 = vpop.f32.mrb[0].mxu0
        %v478 = vadd.f32 0.0, %v477
        %479 = vmatprep.mubr.f32.mxu0 0.0
        %480 = vmatmul.mubr.f32.gmra.mrb[0].mxu0 %v374
        %v481 = vpop.f32.mrb[0].mxu0
        %v482 = vadd.f32 0.0, %v481
        %v483 = vpop.f32.mrb[0].mxu0
        %v484 = vadd.f32 0.0, %v483
        %485 = vmatprep.mubr.f32.mxu0 0.0
        %486 = vmatmul.mubr.f32.gmra.mrb[0].mxu0 %v377
        %v487 = vpop.f32.mrb[0].mxu0
        %v488 = vadd.f32 0.0, %v487
        %v489 = vpop.f32.mrb[0].mxu0
        %v490 = vadd.f32 0.0, %v489
        %491 = vdwg.mxu0
        %492 = vmatprep.subr.mxu0 %v293
        %493 = vmatpush1.msra.mxu0 %v292
        %494 = vmatprep.subr.mxu0 %v301
        %495 = vmatpush1.msra.mxu0 %v300
        %496 = vmatprep.subr.mxu0 %v309
        %497 = vmatpush1.msra.mxu0 %v308
        %498 = vmatprep.subr.mxu0 %v317
        %499 = vmatpush1.msra.mxu0 %v316
        %500 = vmatprep.subr.mxu0 %v325
        %501 = vmatpush1.msra.mxu0 %v324
        %502 = vmatprep.subr.mxu0 %v333
        %503 = vmatpush1.msra.mxu0 %v332
        %504 = vmatprep.subr.mxu0 %v341
        %505 = vmatpush1.msra.mxu0 %v340
        %506 = vmatprep.subr.mxu0 %v349
        %507 = vmatpush1.msra.mxu0 %v348
        %508 = vmatprep.subr.mxu0 0.0
        %509 = vmatpush1.msra.mxu0 0.0
        %510 = vmatprep.subr.mxu0 0.0
        %511 = vmatpush1.msra.mxu0 0.0
        %512 = vmatprep.subr.mxu0 0.0
        %513 = vmatpush1.msra.mxu0 0.0
        %514 = vmatprep.subr.mxu0 0.0
        %515 = vmatpush1.msra.mxu0 0.0
        %516 = vmatprep.subr.mxu0 0.0
        %517 = vmatpush1.msra.mxu0 0.0
        %518 = vmatprep.subr.mxu0 0.0
        %519 = vmatpush1.msra.mxu0 0.0
        %520 = vmatprep.subr.mxu0 0.0
        %521 = vmatpush1.msra.mxu0 0.0
        %522 = vmatprep.subr.mxu0 0.0
        %523 = vmatpush1.msra.mxu0 0.0
        %524 = vmatprep.subr.mxu0 0.0
        %525 = vmatpush1.msra.mxu0 0.0
        %526 = vmatprep.subr.mxu0 0.0
        %527 = vmatpush1.msra.mxu0 0.0
        %528 = vmatprep.subr.mxu0 0.0
        %529 = vmatpush1.msra.mxu0 0.0
        %530 = vmatprep.subr.mxu0 0.0
        %531 = vmatpush1.msra.mxu0 0.0
        %532 = vmatprep.subr.mxu0 0.0
        %533 = vmatpush1.msra.mxu0 0.0
        %534 = vmatprep.subr.mxu0 0.0
        %535 = vmatpush1.msra.mxu0 0.0
        %536 = vmatprep.subr.mxu0 0.0
        %537 = vmatpush1.msra.mxu0 0.0
        %538 = vmatprep.subr.mxu0 0.0
        %539 = vmatpush1.msra.mxu0 0.0
        %540 = vmatprep.subr.mxu0 0.0
        %541 = vmatpush1.msra.mxu0 0.0
        %542 = vmatprep.subr.mxu0 0.0
        %543 = vmatpush1.msra.mxu0 0.0
        %544 = vmatprep.subr.mxu0 0.0
        %545 = vmatpush1.msra.mxu0 0.0
        %546 = vmatprep.subr.mxu0 0.0
        %547 = vmatpush1.msra.mxu0 0.0
        %548 = vmatprep.subr.mxu0 0.0
        %549 = vmatpush1.msra.mxu0 0.0
        %550 = vmatprep.subr.mxu0 0.0
        %551 = vmatpush1.msra.mxu0 0.0
        %552 = vmatprep.subr.mxu0 0.0
        %553 = vmatpush1.msra.mxu0 0.0
        %554 = vmatprep.subr.mxu0 0.0
        %555 = vmatpush1.msra.mxu0 0.0
        %556 = vmatprep.mubr.f32.mxu0 0.0
        %557 = vmatmul.mubr.f32.gmra.mrb[0].mxu0 %v356
        %v558 = vpop.f32.mrb[0].mxu0
        %v559 = vadd.f32 0.0, %v558
        %v560 = vpop.f32.mrb[0].mxu0
        %v561 = vadd.f32 0.0, %v560
        %562 = vmatprep.mubr.f32.mxu0 0.0
        %563 = vmatmul.mubr.f32.gmra.mrb[0].mxu0 %v359
        %v564 = vpop.f32.mrb[0].mxu0
        %v565 = vadd.f32 0.0, %v564
        %v566 = vpop.f32.mrb[0].mxu0
        %v567 = vadd.f32 0.0, %v566
        %568 = vmatprep.mubr.f32.mxu0 0.0
        %569 = vmatmul.mubr.f32.gmra.mrb[0].mxu0 %v362
        %v570 = vpop.f32.mrb[0].mxu0
        %v571 = vadd.f32 0.0, %v570
        %v572 = vpop.f32.mrb[0].mxu0
        %v573 = vadd.f32 0.0, %v572
        %574 = vmatprep.mubr.f32.mxu0 0.0
        %575 = vmatmul.mubr.f32.gmra.mrb[0].mxu0 %v365
        %v576 = vpop.f32.mrb[0].mxu0
        %v577 = vadd.f32 0.0, %v576
        %v578 = vpop.f32.mrb[0].mxu0
        %v579 = vadd.f32 0.0, %v578
        %580 = vmatprep.mubr.f32.mxu0 0.0
        %581 = vmatmul.mubr.f32.gmra.mrb[0].mxu0 %v368
        %v582 = vpop.f32.mrb[0].mxu0
        %v583 = vadd.f32 0.0, %v582
        %v584 = vpop.f32.mrb[0].mxu0
        %v585 = vadd.f32 0.0, %v584
        %586 = vmatprep.mubr.f32.mxu0 0.0
        %587 = vmatmul.mubr.f32.gmra.mrb[0].mxu0 %v371
        %v588 = vpop.f32.mrb[0].mxu0
        %v589 = vadd.f32 0.0, %v588
        %v590 = vpop.f32.mrb[0].mxu0
        %v591 = vadd.f32 0.0, %v590
        %592 = vmatprep.mubr.f32.mxu0 0.0
        %593 = vmatmul.mubr.f32.gmra.mrb[0].mxu0 %v374
        %v594 = vpop.f32.mrb[0].mxu0
        %v595 = vadd.f32 0.0, %v594
        %v596 = vpop.f32.mrb[0].mxu0
        %v597 = vadd.f32 0.0, %v596
        %598 = vmatprep.mubr.f32.mxu0 0.0
        %599 = vmatmul.mubr.f32.gmra.mrb[0].mxu0 %v377
        %v600 = vpop.f32.mrb[0].mxu0
        %v601 = vadd.f32 0.0, %v600
        %v602 = vpop.f32.mrb[0].mxu0
        %v603 = vadd.f32 0.0, %v602
        %604 = vdwg.mxu0
        %605 = vmatprep.subr.mxu0 %v295
        %606 = vmatpush1.msra.mxu0 %v294
        %607 = vmatprep.subr.mxu0 %v303
        %608 = vmatpush1.msra.mxu0 %v302
        %609 = vmatprep.subr.mxu0 %v311
        %610 = vmatpush1.msra.mxu0 %v310
        %611 = vmatprep.subr.mxu0 %v319
        %612 = vmatpush1.msra.mxu0 %v318
        %613 = vmatprep.subr.mxu0 %v327
        %614 = vmatpush1.msra.mxu0 %v326
        %615 = vmatprep.subr.mxu0 %v335
        %616 = vmatpush1.msra.mxu0 %v334
        %617 = vmatprep.subr.mxu0 %v343
        %618 = vmatpush1.msra.mxu0 %v342
        %619 = vmatprep.subr.mxu0 %v351
        %620 = vmatpush1.msra.mxu0 %v350
        %621 = vmatprep.subr.mxu0 0.0
        %622 = vmatpush1.msra.mxu0 0.0
        %623 = vmatprep.subr.mxu0 0.0
        %624 = vmatpush1.msra.mxu0 0.0
        %625 = vmatprep.subr.mxu0 0.0
        %626 = vmatpush1.msra.mxu0 0.0
        %627 = vmatprep.subr.mxu0 0.0
        %628 = vmatpush1.msra.mxu0 0.0
        %629 = vmatprep.subr.mxu0 0.0
        %630 = vmatpush1.msra.mxu0 0.0
        %631 = vmatprep.subr.mxu0 0.0
        %632 = vmatpush1.msra.mxu0 0.0
        %633 = vmatprep.subr.mxu0 0.0
        %634 = vmatpush1.msra.mxu0 0.0
        %635 = vmatprep.subr.mxu0 0.0
        %636 = vmatpush1.msra.mxu0 0.0
        %637 = vmatprep.subr.mxu0 0.0
        %638 = vmatpush1.msra.mxu0 0.0
        %639 = vmatprep.subr.mxu0 0.0
        %640 = vmatpush1.msra.mxu0 0.0
        %641 = vmatprep.subr.mxu0 0.0
        %642 = vmatpush1.msra.mxu0 0.0
        %643 = vmatprep.subr.mxu0 0.0
        %644 = vmatpush1.msra.mxu0 0.0
        %645 = vmatprep.subr.mxu0 0.0
        %646 = vmatpush1.msra.mxu0 0.0
        %647 = vmatprep.subr.mxu0 0.0
        %648 = vmatpush1.msra.mxu0 0.0
        %649 = vmatprep.subr.mxu0 0.0
        %650 = vmatpush1.msra.mxu0 0.0
        %651 = vmatprep.subr.mxu0 0.0
        %652 = vmatpush1.msra.mxu0 0.0
        %653 = vmatprep.subr.mxu0 0.0
        %654 = vmatpush1.msra.mxu0 0.0
        %655 = vmatprep.subr.mxu0 0.0
        %656 = vmatpush1.msra.mxu0 0.0
        %657 = vmatprep.subr.mxu0 0.0
        %658 = vmatpush1.msra.mxu0 0.0
        %659 = vmatprep.subr.mxu0 0.0
        %660 = vmatpush1.msra.mxu0 0.0
        %661 = vmatprep.subr.mxu0 0.0
        %662 = vmatpush1.msra.mxu0 0.0
        %663 = vmatprep.subr.mxu0 0.0
        %664 = vmatpush1.msra.mxu0 0.0
        %665 = vmatprep.subr.mxu0 0.0
        %666 = vmatpush1.msra.mxu0 0.0
        %667 = vmatprep.subr.mxu0 0.0
        %668 = vmatpush1.msra.mxu0 0.0
        %669 = vmatprep.mubr.f32.mxu0 0.0
        %670 = vmatmul.mubr.f32.gmra.mrb[0].mxu0 %v356
        %v671 = vpop.f32.mrb[0].mxu0
        %v672 = vadd.f32 0.0, %v671
        %v673 = vpop.f32.mrb[0].mxu0
        %v674 = vadd.f32 0.0, %v673
        %675 = vmatprep.mubr.f32.mxu0 0.0
        %676 = vmatmul.mubr.f32.gmra.mrb[0].mxu0 %v359
        %v677 = vpop.f32.mrb[0].mxu0
        %v678 = vadd.f32 0.0, %v677
        %v679 = vpop.f32.mrb[0].mxu0
        %v680 = vadd.f32 0.0, %v679
        %681 = vmatprep.mubr.f32.mxu0 0.0
        %682 = vmatmul.mubr.f32.gmra.mrb[0].mxu0 %v362
        %v683 = vpop.f32.mrb[0].mxu0
        %v684 = vadd.f32 0.0, %v683
        %v685 = vpop.f32.mrb[0].mxu0
        %v686 = vadd.f32 0.0, %v685
        %687 = vmatprep.mubr.f32.mxu0 0.0
        %688 = vmatmul.mubr.f32.gmra.mrb[0].mxu0 %v365
        %v689 = vpop.f32.mrb[0].mxu0
        %v690 = vadd.f32 0.0, %v689
        %v691 = vpop.f32.mrb[0].mxu0
        %v692 = vadd.f32 0.0, %v691
        %693 = vmatprep.mubr.f32.mxu0 0.0
        %694 = vmatmul.mubr.f32.gmra.mrb[0].mxu0 %v368
        %v695 = vpop.f32.mrb[0].mxu0
        %v696 = vadd.f32 0.0, %v695
        %v697 = vpop.f32.mrb[0].mxu0
        %v698 = vadd.f32 0.0, %v697
        %699 = vmatprep.mubr.f32.mxu0 0.0
        %700 = vmatmul.mubr.f32.gmra.mrb[0].mxu0 %v371
        %v701 = vpop.f32.mrb[0].mxu0
        %v702 = vadd.f32 0.0, %v701
        %v703 = vpop.f32.mrb[0].mxu0
        %v704 = vadd.f32 0.0, %v703
        %705 = vmatprep.mubr.f32.mxu0 0.0
        %706 = vmatmul.mubr.f32.gmra.mrb[0].mxu0 %v374
        %v707 = vpop.f32.mrb[0].mxu0
        %v708 = vadd.f32 0.0, %v707
        %v709 = vpop.f32.mrb[0].mxu0
        %v710 = vadd.f32 0.0, %v709
        %711 = vmatprep.mubr.f32.mxu0 0.0
        %712 = vmatmul.mubr.f32.gmra.mrb[0].mxu0 %v377
        %v713 = vpop.f32.mrb[0].mxu0
        %v714 = vadd.f32 0.0, %v713
        %v715 = vpop.f32.mrb[0].mxu0
        %v716 = vadd.f32 0.0, %v715
        %717 = vdwg.mxu0
        %718 = vmatprep.subr.mxu0 %v297
        %719 = vmatpush1.msra.mxu0 %v296
        %720 = vmatprep.subr.mxu0 %v305
        %721 = vmatpush1.msra.mxu0 %v304
        %722 = vmatprep.subr.mxu0 %v313
        %723 = vmatpush1.msra.mxu0 %v312
        %724 = vmatprep.subr.mxu0 %v321
        %725 = vmatpush1.msra.mxu0 %v320
        %726 = vmatprep.subr.mxu0 %v329
        %727 = vmatpush1.msra.mxu0 %v328
        %728 = vmatprep.subr.mxu0 %v337
        %729 = vmatpush1.msra.mxu0 %v336
        %730 = vmatprep.subr.mxu0 %v345
        %731 = vmatpush1.msra.mxu0 %v344
        %732 = vmatprep.subr.mxu0 %v353
        %733 = vmatpush1.msra.mxu0 %v352
        %734 = vmatprep.subr.mxu0 0.0
        %735 = vmatpush1.msra.mxu0 0.0
        %736 = vmatprep.subr.mxu0 0.0
        %737 = vmatpush1.msra.mxu0 0.0
        %738 = vmatprep.subr.mxu0 0.0
        %739 = vmatpush1.msra.mxu0 0.0
        %740 = vmatprep.subr.mxu0 0.0
        %741 = vmatpush1.msra.mxu0 0.0
        %742 = vmatprep.subr.mxu0 0.0
        %743 = vmatpush1.msra.mxu0 0.0
        %744 = vmatprep.subr.mxu0 0.0
        %745 = vmatpush1.msra.mxu0 0.0
        %746 = vmatprep.subr.mxu0 0.0
        %747 = vmatpush1.msra.mxu0 0.0
        %748 = vmatprep.subr.mxu0 0.0
        %749 = vmatpush1.msra.mxu0 0.0
        %750 = vmatprep.subr.mxu0 0.0
        %751 = vmatpush1.msra.mxu0 0.0
        %752 = vmatprep.subr.mxu0 0.0
        %753 = vmatpush1.msra.mxu0 0.0
        %754 = vmatprep.subr.mxu0 0.0
        %755 = vmatpush1.msra.mxu0 0.0
        %756 = vmatprep.subr.mxu0 0.0
        %757 = vmatpush1.msra.mxu0 0.0
        %758 = vmatprep.subr.mxu0 0.0
        %759 = vmatpush1.msra.mxu0 0.0
        %760 = vmatprep.subr.mxu0 0.0
        %761 = vmatpush1.msra.mxu0 0.0
        %762 = vmatprep.subr.mxu0 0.0
        %763 = vmatpush1.msra.mxu0 0.0
        %764 = vmatprep.subr.mxu0 0.0
        %765 = vmatpush1.msra.mxu0 0.0
        %766 = vmatprep.subr.mxu0 0.0
        %767 = vmatpush1.msra.mxu0 0.0
        %768 = vmatprep.subr.mxu0 0.0
        %769 = vmatpush1.msra.mxu0 0.0
        %770 = vmatprep.subr.mxu0 0.0
        %771 = vmatpush1.msra.mxu0 0.0
        %772 = vmatprep.subr.mxu0 0.0
        %773 = vmatpush1.msra.mxu0 0.0
        %774 = vmatprep.subr.mxu0 0.0
        %775 = vmatpush1.msra.mxu0 0.0
        %776 = vmatprep.subr.mxu0 0.0
        %777 = vmatpush1.msra.mxu0 0.0
        %778 = vmatprep.subr.mxu0 0.0
        %779 = vmatpush1.msra.mxu0 0.0
        %780 = vmatprep.subr.mxu0 0.0
        %781 = vmatpush1.msra.mxu0 0.0
        %782 = vmatprep.mubr.f32.mxu0 0.0
        %783 = vmatmul.mubr.f32.gmra.mrb[0].mxu0 %v356
        %v784 = vpop.f32.mrb[0].mxu0
        %v785 = vadd.f32 0.0, %v784
        %v786 = vpop.f32.mrb[0].mxu0
        %v787 = vadd.f32 0.0, %v786
        %788 = vmatprep.mubr.f32.mxu0 0.0
        %789 = vmatmul.mubr.f32.gmra.mrb[0].mxu0 %v359
        %v790 = vpop.f32.mrb[0].mxu0
        %v791 = vadd.f32 0.0, %v790
        %v792 = vpop.f32.mrb[0].mxu0
        %v793 = vadd.f32 0.0, %v792
        %794 = vmatprep.mubr.f32.mxu0 0.0
        %795 = vmatmul.mubr.f32.gmra.mrb[0].mxu0 %v362
        %v796 = vpop.f32.mrb[0].mxu0
        %v797 = vadd.f32 0.0, %v796
        %v798 = vpop.f32.mrb[0].mxu0
        %v799 = vadd.f32 0.0, %v798
        %800 = vmatprep.mubr.f32.mxu0 0.0
        %801 = vmatmul.mubr.f32.gmra.mrb[0].mxu0 %v365
        %v802 = vpop.f32.mrb[0].mxu0
        %v803 = vadd.f32 0.0, %v802
        %v804 = vpop.f32.mrb[0].mxu0
        %v805 = vadd.f32 0.0, %v804
        %806 = vmatprep.mubr.f32.mxu0 0.0
        %807 = vmatmul.mubr.f32.gmra.mrb[0].mxu0 %v368
        %v808 = vpop.f32.mrb[0].mxu0
        %v809 = vadd.f32 0.0, %v808
        %v810 = vpop.f32.mrb[0].mxu0
        %v811 = vadd.f32 0.0, %v810
        %812 = vmatprep.mubr.f32.mxu0 0.0
        %813 = vmatmul.mubr.f32.gmra.mrb[0].mxu0 %v371
        %v814 = vpop.f32.mrb[0].mxu0
        %v815 = vadd.f32 0.0, %v814
        %v816 = vpop.f32.mrb[0].mxu0
        %v817 = vadd.f32 0.0, %v816
        %818 = vmatprep.mubr.f32.mxu0 0.0
        %819 = vmatmul.mubr.f32.gmra.mrb[0].mxu0 %v374
        %v820 = vpop.f32.mrb[0].mxu0
        %v821 = vadd.f32 0.0, %v820
        %v822 = vpop.f32.mrb[0].mxu0
        %v823 = vadd.f32 0.0, %v822
        %824 = vmatprep.mubr.f32.mxu0 0.0
        %825 = vmatmul.mubr.f32.gmra.mrb[0].mxu0 %v377
        %v826 = vpop.f32.mrb[0].mxu0
        %v827 = vadd.f32 0.0, %v826
        %v828 = vpop.f32.mrb[0].mxu0
        %v829 = vadd.f32 0.0, %v828
        %830 = vdwg.mxu0
        %v831 = vld [vmem:[%s271] sm:$0xff]
        %v832 = vld [vmem:[%s271 + $0x8] sm:$0xff]
        %v833 = vld [vmem:[%s271 + $0x10] sm:$0xff]
        %v834 = vld [vmem:[%s271 + $0x18] sm:$0xff]
        %v835 = vld [vmem:[%s271 + $0x20] sm:$0xff]
        %v836 = vld [vmem:[%s271 + $0x28] sm:$0xff]
        %v837 = vld [vmem:[%s271 + $0x30] sm:$0xff]
        %v838 = vld [vmem:[%s271 + $0x38] sm:$0xff]
        %v839 = vld [vmem:[%s278] sm:$0xff]
        %v840 = vld [vmem:[%s278 + $0x8] sm:$0xff]
        %v841 = vld [vmem:[%s278 + $0x10] sm:$0xff]
        %v842 = vld [vmem:[%s278 + $0x18] sm:$0xff]
        %v843 = vld [vmem:[%s278 + $0x20] sm:$0xff]
        %v844 = vld [vmem:[%s278 + $0x28] sm:$0xff]
        %v845 = vld [vmem:[%s278 + $0x30] sm:$0xff]
        %v846 = vld [vmem:[%s278 + $0x38] sm:$0xff]
        %v847 = vld [vmem:[%s278 + $0x40] sm:$0xff]
        %v848 = vld [vmem:[%s278 + $0x48] sm:$0xff]
        %v849 = vld [vmem:[%s278 + $0x50] sm:$0xff]
        %v850 = vld [vmem:[%s278 + $0x58] sm:$0xff]
        %v851 = vld [vmem:[%s278 + $0x60] sm:$0xff]
        %v852 = vld [vmem:[%s278 + $0x68] sm:$0xff]
        %v853 = vld [vmem:[%s278 + $0x70] sm:$0xff]
        %v854 = vld [vmem:[%s278 + $0x78] sm:$0xff]
        %v855 = vld [vmem:[%s278 + $0x80] sm:$0xff]
        %v856 = vld [vmem:[%s278 + $0x88] sm:$0xff]
        %v857 = vld [vmem:[%s278 + $0x90] sm:$0xff]
        %v858 = vld [vmem:[%s278 + $0x98] sm:$0xff]
        %v859 = vld [vmem:[%s278 + $0xa0] sm:$0xff]
        %v860 = vld [vmem:[%s278 + $0xa8] sm:$0xff]
        %v861 = vld [vmem:[%s278 + $0xb0] sm:$0xff]
        %v862 = vld [vmem:[%s278 + $0xb8] sm:$0xff]
        %v863 = vld [vmem:[%s278 + $0xc0] sm:$0xff]
        %v864 = vld [vmem:[%s278 + $0xc8] sm:$0xff]
        %v865 = vld [vmem:[%s278 + $0xd0] sm:$0xff]
        %v866 = vld [vmem:[%s278 + $0xd8] sm:$0xff]
        %v867 = vld [vmem:[%s278 + $0xe0] sm:$0xff]
        %v868 = vld [vmem:[%s278 + $0xe8] sm:$0xff]
        %v869 = vld [vmem:[%s278 + $0xf0] sm:$0xff]
        %v870 = vld [vmem:[%s278 + $0xf8] sm:$0xff]
        %vm871 = vcmask 261120
        %v873 = vsel %vm871, %v831, 0
        %v876 = vsel %vm871, %v832, 0
        %v879 = vsel %vm871, %v833, 0
        %v882 = vsel %vm871, %v834, 0
        %v885 = vsel %vm871, %v835, 0
        %v888 = vsel %vm871, %v836, 0
        %v891 = vsel %vm871, %v837, 0
        %v894 = vsel %vm871, %v838, 0
        %896 = vmatprep.subr.mxu0 %v840
        %897 = vmatpush1.msra.mxu0 %v839
        %898 = vmatprep.subr.mxu0 %v848
        %899 = vmatpush1.msra.mxu0 %v847
        %900 = vmatprep.subr.mxu0 %v856
        %901 = vmatpush1.msra.mxu0 %v855
        %902 = vmatprep.subr.mxu0 %v864
        %903 = vmatpush1.msra.mxu0 %v863
        %904 = vmatprep.subr.mxu0 0.0
        %905 = vmatpush1.msra.mxu0 0.0
        %906 = vmatprep.subr.mxu0 0.0
        %907 = vmatpush1.msra.mxu0 0.0
        %908 = vmatprep.subr.mxu0 0.0
        %909 = vmatpush1.msra.mxu0 0.0
        %910 = vmatprep.subr.mxu0 0.0
        %911 = vmatpush1.msra.mxu0 0.0
        %912 = vmatprep.subr.mxu0 0.0
        %913 = vmatpush1.msra.mxu0 0.0
        %914 = vmatprep.subr.mxu0 0.0
        %915 = vmatpush1.msra.mxu0 0.0
        %916 = vmatprep.subr.mxu0 0.0
        %917 = vmatpush1.msra.mxu0 0.0
        %918 = vmatprep.subr.mxu0 0.0
        %919 = vmatpush1.msra.mxu0 0.0
        %920 = vmatprep.subr.mxu0 0.0
        %921 = vmatpush1.msra.mxu0 0.0
        %922 = vmatprep.subr.mxu0 0.0
        %923 = vmatpush1.msra.mxu0 0.0
        %924 = vmatprep.subr.mxu0 0.0
        %925 = vmatpush1.msra.mxu0 0.0
        %926 = vmatprep.subr.mxu0 0.0
        %927 = vmatpush1.msra.mxu0 0.0
        %928 = vmatprep.subr.mxu0 0.0
        %929 = vmatpush1.msra.mxu0 0.0
        %930 = vmatprep.subr.mxu0 0.0
        %931 = vmatpush1.msra.mxu0 0.0
        %932 = vmatprep.subr.mxu0 0.0
        %933 = vmatpush1.msra.mxu0 0.0
        %934 = vmatprep.subr.mxu0 0.0
        %935 = vmatpush1.msra.mxu0 0.0
        %936 = vmatprep.subr.mxu0 0.0
        %937 = vmatpush1.msra.mxu0 0.0
        %938 = vmatprep.subr.mxu0 0.0
        %939 = vmatpush1.msra.mxu0 0.0
        %940 = vmatprep.subr.mxu0 0.0
        %941 = vmatpush1.msra.mxu0 0.0
        %942 = vmatprep.subr.mxu0 0.0
        %943 = vmatpush1.msra.mxu0 0.0
        %944 = vmatprep.subr.mxu0 0.0
        %945 = vmatpush1.msra.mxu0 0.0
        %946 = vmatprep.subr.mxu0 0.0
        %947 = vmatpush1.msra.mxu0 0.0
        %948 = vmatprep.subr.mxu0 0.0
        %949 = vmatpush1.msra.mxu0 0.0
        %950 = vmatprep.subr.mxu0 0.0
        %951 = vmatpush1.msra.mxu0 0.0
        %952 = vmatprep.subr.mxu0 0.0
        %953 = vmatpush1.msra.mxu0 0.0
        %954 = vmatprep.subr.mxu0 0.0
        %955 = vmatpush1.msra.mxu0 0.0
        %956 = vmatprep.subr.mxu0 0.0
        %957 = vmatpush1.msra.mxu0 0.0
        %958 = vmatprep.subr.mxu0 0.0
        %959 = vmatpush1.msra.mxu0 0.0
        %960 = vmatprep.mubr.f32.mxu0 0.0
        %961 = vmatmul.mubr.f32.gmra.mrb[0].mxu0 %v873
        %v962 = vpop.f32.mrb[0].mxu0
        %v963 = vadd.f32 0.0, %v962
        %v964 = vpop.f32.mrb[0].mxu0
        %v965 = vadd.f32 0.0, %v964
        %966 = vmatprep.mubr.f32.mxu0 0.0
        %967 = vmatmul.mubr.f32.gmra.mrb[0].mxu0 %v876
        %v968 = vpop.f32.mrb[0].mxu0
        %v969 = vadd.f32 0.0, %v968
        %v970 = vpop.f32.mrb[0].mxu0
        %v971 = vadd.f32 0.0, %v970
        %972 = vmatprep.mubr.f32.mxu0 0.0
        %973 = vmatmul.mubr.f32.gmra.mrb[0].mxu0 %v879
        %v974 = vpop.f32.mrb[0].mxu0
        %v975 = vadd.f32 0.0, %v974
        %v976 = vpop.f32.mrb[0].mxu0
        %v977 = vadd.f32 0.0, %v976
        %978 = vmatprep.mubr.f32.mxu0 0.0
        %979 = vmatmul.mubr.f32.gmra.mrb[0].mxu0 %v882
        %v980 = vpop.f32.mrb[0].mxu0
        %v981 = vadd.f32 0.0, %v980
        %v982 = vpop.f32.mrb[0].mxu0
        %v983 = vadd.f32 0.0, %v982
        %984 = vmatprep.mubr.f32.mxu0 0.0
        %985 = vmatmul.mubr.f32.gmra.mrb[0].mxu0 %v885
        %v986 = vpop.f32.mrb[0].mxu0
        %v987 = vadd.f32 0.0, %v986
        %v988 = vpop.f32.mrb[0].mxu0
        %v989 = vadd.f32 0.0, %v988
        %990 = vmatprep.mubr.f32.mxu0 0.0
        %991 = vmatmul.mubr.f32.gmra.mrb[0].mxu0 %v888
        %v992 = vpop.f32.mrb[0].mxu0
        %v993 = vadd.f32 0.0, %v992
        %v994 = vpop.f32.mrb[0].mxu0
        %v995 = vadd.f32 0.0, %v994
        %996 = vmatprep.mubr.f32.mxu0 0.0
        %997 = vmatmul.mubr.f32.gmra.mrb[0].mxu0 %v891
        %v998 = vpop.f32.mrb[0].mxu0
        %v999 = vadd.f32 0.0, %v998
        %v1000 = vpop.f32.mrb[0].mxu0
        %v1001 = vadd.f32 0.0, %v1000
        %1002 = vmatprep.mubr.f32.mxu0 0.0
        %1003 = vmatmul.mubr.f32.gmra.mrb[0].mxu0 %v894
        %v1004 = vpop.f32.mrb[0].mxu0
        %v1005 = vadd.f32 0.0, %v1004
        %v1006 = vpop.f32.mrb[0].mxu0
        %v1007 = vadd.f32 0.0, %v1006
        %1008 = vdwg.mxu0
        %1009 = vmatprep.subr.mxu0 %v842
        %1010 = vmatpush1.msra.mxu0 %v841
        %1011 = vmatprep.subr.mxu0 %v850
        %1012 = vmatpush1.msra.mxu0 %v849
        %1013 = vmatprep.subr.mxu0 %v858
        %1014 = vmatpush1.msra.mxu0 %v857
        %1015 = vmatprep.subr.mxu0 %v866
        %1016 = vmatpush1.msra.mxu0 %v865
        %1017 = vmatprep.subr.mxu0 0.0
        %1018 = vmatpush1.msra.mxu0 0.0
        %1019 = vmatprep.subr.mxu0 0.0
        %1020 = vmatpush1.msra.mxu0 0.0
        %1021 = vmatprep.subr.mxu0 0.0
        %1022 = vmatpush1.msra.mxu0 0.0
        %1023 = vmatprep.subr.mxu0 0.0
        %1024 = vmatpush1.msra.mxu0 0.0
        %1025 = vmatprep.subr.mxu0 0.0
        %1026 = vmatpush1.msra.mxu0 0.0
        %1027 = vmatprep.subr.mxu0 0.0
        %1028 = vmatpush1.msra.mxu0 0.0
        %1029 = vmatprep.subr.mxu0 0.0
        %1030 = vmatpush1.msra.mxu0 0.0
        %1031 = vmatprep.subr.mxu0 0.0
        %1032 = vmatpush1.msra.mxu0 0.0
        %1033 = vmatprep.subr.mxu0 0.0
        %1034 = vmatpush1.msra.mxu0 0.0
        %1035 = vmatprep.subr.mxu0 0.0
        %1036 = vmatpush1.msra.mxu0 0.0
        %1037 = vmatprep.subr.mxu0 0.0
        %1038 = vmatpush1.msra.mxu0 0.0
        %1039 = vmatprep.subr.mxu0 0.0
        %1040 = vmatpush1.msra.mxu0 0.0
        %1041 = vmatprep.subr.mxu0 0.0
        %1042 = vmatpush1.msra.mxu0 0.0
        %1043 = vmatprep.subr.mxu0 0.0
        %1044 = vmatpush1.msra.mxu0 0.0
        %1045 = vmatprep.subr.mxu0 0.0
        %1046 = vmatpush1.msra.mxu0 0.0
        %1047 = vmatprep.subr.mxu0 0.0
        %1048 = vmatpush1.msra.mxu0 0.0
        %1049 = vmatprep.subr.mxu0 0.0
        %1050 = vmatpush1.msra.mxu0 0.0
        %1051 = vmatprep.subr.mxu0 0.0
        %1052 = vmatpush1.msra.mxu0 0.0
        %1053 = vmatprep.subr.mxu0 0.0
        %1054 = vmatpush1.msra.mxu0 0.0
        %1055 = vmatprep.subr.mxu0 0.0
        %1056 = vmatpush1.msra.mxu0 0.0
        %1057 = vmatprep.subr.mxu0 0.0
        %1058 = vmatpush1.msra.mxu0 0.0
        %1059 = vmatprep.subr.mxu0 0.0
        %1060 = vmatpush1.msra.mxu0 0.0
        %1061 = vmatprep.subr.mxu0 0.0
        %1062 = vmatpush1.msra.mxu0 0.0
        %1063 = vmatprep.subr.mxu0 0.0
        %1064 = vmatpush1.msra.mxu0 0.0
        %1065 = vmatprep.subr.mxu0 0.0
        %1066 = vmatpush1.msra.mxu0 0.0
        %1067 = vmatprep.subr.mxu0 0.0
        %1068 = vmatpush1.msra.mxu0 0.0
        %1069 = vmatprep.subr.mxu0 0.0
        %1070 = vmatpush1.msra.mxu0 0.0
        %1071 = vmatprep.subr.mxu0 0.0
        %1072 = vmatpush1.msra.mxu0 0.0
        %1073 = vmatprep.mubr.f32.mxu0 0.0
        %1074 = vmatmul.mubr.f32.gmra.mrb[0].mxu0 %v873
        %v1075 = vpop.f32.mrb[0].mxu0
        %v1076 = vadd.f32 0.0, %v1075
        %v1077 = vpop.f32.mrb[0].mxu0
        %v1078 = vadd.f32 0.0, %v1077
        %1079 = vmatprep.mubr.f32.mxu0 0.0
        %1080 = vmatmul.mubr.f32.gmra.mrb[0].mxu0 %v876
        %v1081 = vpop.f32.mrb[0].mxu0
        %v1082 = vadd.f32 0.0, %v1081
        %v1083 = vpop.f32.mrb[0].mxu0
        %v1084 = vadd.f32 0.0, %v1083
        %1085 = vmatprep.mubr.f32.mxu0 0.0
        %1086 = vmatmul.mubr.f32.gmra.mrb[0].mxu0 %v879
        %v1087 = vpop.f32.mrb[0].mxu0
        %v1088 = vadd.f32 0.0, %v1087
        %v1089 = vpop.f32.mrb[0].mxu0
        %v1090 = vadd.f32 0.0, %v1089
        %1091 = vmatprep.mubr.f32.mxu0 0.0
        %1092 = vmatmul.mubr.f32.gmra.mrb[0].mxu0 %v882
        %v1093 = vpop.f32.mrb[0].mxu0
        %v1094 = vadd.f32 0.0, %v1093
        %v1095 = vpop.f32.mrb[0].mxu0
        %v1096 = vadd.f32 0.0, %v1095
        %1097 = vmatprep.mubr.f32.mxu0 0.0
        %1098 = vmatmul.mubr.f32.gmra.mrb[0].mxu0 %v885
        %v1099 = vpop.f32.mrb[0].mxu0
        %v1100 = vadd.f32 0.0, %v1099
        %v1101 = vpop.f32.mrb[0].mxu0
        %v1102 = vadd.f32 0.0, %v1101
        %1103 = vmatprep.mubr.f32.mxu0 0.0
        %1104 = vmatmul.mubr.f32.gmra.mrb[0].mxu0 %v888
        %v1105 = vpop.f32.mrb[0].mxu0
        %v1106 = vadd.f32 0.0, %v1105
        %v1107 = vpop.f32.mrb[0].mxu0
        %v1108 = vadd.f32 0.0, %v1107
        %1109 = vmatprep.mubr.f32.mxu0 0.0
        %1110 = vmatmul.mubr.f32.gmra.mrb[0].mxu0 %v891
        %v1111 = vpop.f32.mrb[0].mxu0
        %v1112 = vadd.f32 0.0, %v1111
        %v1113 = vpop.f32.mrb[0].mxu0
        %v1114 = vadd.f32 0.0, %v1113
        %1115 = vmatprep.mubr.f32.mxu0 0.0
        %1116 = vmatmul.mubr.f32.gmra.mrb[0].mxu0 %v894
        %v1117 = vpop.f32.mrb[0].mxu0
        %v1118 = vadd.f32 0.0, %v1117
        %v1119 = vpop.f32.mrb[0].mxu0
        %v1120 = vadd.f32 0.0, %v1119
        %1121 = vdwg.mxu0
        %1122 = vmatprep.subr.mxu0 %v844
        %1123 = vmatpush1.msra.mxu0 %v843
        %1124 = vmatprep.subr.mxu0 %v852
        %1125 = vmatpush1.msra.mxu0 %v851
        %1126 = vmatprep.subr.mxu0 %v860
        %1127 = vmatpush1.msra.mxu0 %v859
        %1128 = vmatprep.subr.mxu0 %v868
        %1129 = vmatpush1.msra.mxu0 %v867
        %1130 = vmatprep.subr.mxu0 0.0
        %1131 = vmatpush1.msra.mxu0 0.0
        %1132 = vmatprep.subr.mxu0 0.0
        %1133 = vmatpush1.msra.mxu0 0.0
        %1134 = vmatprep.subr.mxu0 0.0
        %1135 = vmatpush1.msra.mxu0 0.0
        %1136 = vmatprep.subr.mxu0 0.0
        %1137 = vmatpush1.msra.mxu0 0.0
        %1138 = vmatprep.subr.mxu0 0.0
        %1139 = vmatpush1.msra.mxu0 0.0
        %1140 = vmatprep.subr.mxu0 0.0
        %1141 = vmatpush1.msra.mxu0 0.0
        %1142 = vmatprep.subr.mxu0 0.0
        %1143 = vmatpush1.msra.mxu0 0.0
        %1144 = vmatprep.subr.mxu0 0.0
        %1145 = vmatpush1.msra.mxu0 0.0
        %1146 = vmatprep.subr.mxu0 0.0
        %1147 = vmatpush1.msra.mxu0 0.0
        %1148 = vmatprep.subr.mxu0 0.0
        %1149 = vmatpush1.msra.mxu0 0.0
        %1150 = vmatprep.subr.mxu0 0.0
        %1151 = vmatpush1.msra.mxu0 0.0
        %1152 = vmatprep.subr.mxu0 0.0
        %1153 = vmatpush1.msra.mxu0 0.0
        %1154 = vmatprep.subr.mxu0 0.0
        %1155 = vmatpush1.msra.mxu0 0.0
        %1156 = vmatprep.subr.mxu0 0.0
        %1157 = vmatpush1.msra.mxu0 0.0
        %1158 = vmatprep.subr.mxu0 0.0
        %1159 = vmatpush1.msra.mxu0 0.0
        %1160 = vmatprep.subr.mxu0 0.0
        %1161 = vmatpush1.msra.mxu0 0.0
        %1162 = vmatprep.subr.mxu0 0.0
        %1163 = vmatpush1.msra.mxu0 0.0
        %1164 = vmatprep.subr.mxu0 0.0
        %1165 = vmatpush1.msra.mxu0 0.0
        %1166 = vmatprep.subr.mxu0 0.0
        %1167 = vmatpush1.msra.mxu0 0.0
        %1168 = vmatprep.subr.mxu0 0.0
        %1169 = vmatpush1.msra.mxu0 0.0
        %1170 = vmatprep.subr.mxu0 0.0
        %1171 = vmatpush1.msra.mxu0 0.0
        %1172 = vmatprep.subr.mxu0 0.0
        %1173 = vmatpush1.msra.mxu0 0.0
        %1174 = vmatprep.subr.mxu0 0.0
        %1175 = vmatpush1.msra.mxu0 0.0
        %1176 = vmatprep.subr.mxu0 0.0
        %1177 = vmatpush1.msra.mxu0 0.0
        %1178 = vmatprep.subr.mxu0 0.0
        %1179 = vmatpush1.msra.mxu0 0.0
        %1180 = vmatprep.subr.mxu0 0.0
        %1181 = vmatpush1.msra.mxu0 0.0
        %1182 = vmatprep.subr.mxu0 0.0
        %1183 = vmatpush1.msra.mxu0 0.0
        %1184 = vmatprep.subr.mxu0 0.0
        %1185 = vmatpush1.msra.mxu0 0.0
        %1186 = vmatprep.mubr.f32.mxu0 0.0
        %1187 = vmatmul.mubr.f32.gmra.mrb[0].mxu0 %v873
        %v1188 = vpop.f32.mrb[0].mxu0
        %v1189 = vadd.f32 0.0, %v1188
        %v1190 = vpop.f32.mrb[0].mxu0
        %v1191 = vadd.f32 0.0, %v1190
        %1192 = vmatprep.mubr.f32.mxu0 0.0
        %1193 = vmatmul.mubr.f32.gmra.mrb[0].mxu0 %v876
        %v1194 = vpop.f32.mrb[0].mxu0
        %v1195 = vadd.f32 0.0, %v1194
        %v1196 = vpop.f32.mrb[0].mxu0
        %v1197 = vadd.f32 0.0, %v1196
        %1198 = vmatprep.mubr.f32.mxu0 0.0
        %1199 = vmatmul.mubr.f32.gmra.mrb[0].mxu0 %v879
        %v1200 = vpop.f32.mrb[0].mxu0
        %v1201 = vadd.f32 0.0, %v1200
        %v1202 = vpop.f32.mrb[0].mxu0
        %v1203 = vadd.f32 0.0, %v1202
        %1204 = vmatprep.mubr.f32.mxu0 0.0
        %1205 = vmatmul.mubr.f32.gmra.mrb[0].mxu0 %v882
        %v1206 = vpop.f32.mrb[0].mxu0
        %v1207 = vadd.f32 0.0, %v1206
        %v1208 = vpop.f32.mrb[0].mxu0
        %v1209 = vadd.f32 0.0, %v1208
        %1210 = vmatprep.mubr.f32.mxu0 0.0
        %1211 = vmatmul.mubr.f32.gmra.mrb[0].mxu0 %v885
        %v1212 = vpop.f32.mrb[0].mxu0
        %v1213 = vadd.f32 0.0, %v1212
        %v1214 = vpop.f32.mrb[0].mxu0
        %v1215 = vadd.f32 0.0, %v1214
        %1216 = vmatprep.mubr.f32.mxu0 0.0
        %1217 = vmatmul.mubr.f32.gmra.mrb[0].mxu0 %v888
        %v1218 = vpop.f32.mrb[0].mxu0
        %v1219 = vadd.f32 0.0, %v1218
        %v1220 = vpop.f32.mrb[0].mxu0
        %v1221 = vadd.f32 0.0, %v1220
        %1222 = vmatprep.mubr.f32.mxu0 0.0
        %1223 = vmatmul.mubr.f32.gmra.mrb[0].mxu0 %v891
        %v1224 = vpop.f32.mrb[0].mxu0
        %v1225 = vadd.f32 0.0, %v1224
        %v1226 = vpop.f32.mrb[0].mxu0
        %v1227 = vadd.f32 0.0, %v1226
        %1228 = vmatprep.mubr.f32.mxu0 0.0
        %1229 = vmatmul.mubr.f32.gmra.mrb[0].mxu0 %v894
        %v1230 = vpop.f32.mrb[0].mxu0
        %v1231 = vadd.f32 0.0, %v1230
        %v1232 = vpop.f32.mrb[0].mxu0
        %v1233 = vadd.f32 0.0, %v1232
        %1234 = vdwg.mxu0
        %1235 = vmatprep.subr.mxu0 %v846
        %1236 = vmatpush1.msra.mxu0 %v845
        %1237 = vmatprep.subr.mxu0 %v854
        %1238 = vmatpush1.msra.mxu0 %v853
        %1239 = vmatprep.subr.mxu0 %v862
        %1240 = vmatpush1.msra.mxu0 %v861
        %1241 = vmatprep.subr.mxu0 %v870
        %1242 = vmatpush1.msra.mxu0 %v869
        %1243 = vmatprep.subr.mxu0 0.0
        %1244 = vmatpush1.msra.mxu0 0.0
        %1245 = vmatprep.subr.mxu0 0.0
        %1246 = vmatpush1.msra.mxu0 0.0
        %1247 = vmatprep.subr.mxu0 0.0
        %1248 = vmatpush1.msra.mxu0 0.0
        %1249 = vmatprep.subr.mxu0 0.0
        %1250 = vmatpush1.msra.mxu0 0.0
        %1251 = vmatprep.subr.mxu0 0.0
        %1252 = vmatpush1.msra.mxu0 0.0
        %1253 = vmatprep.subr.mxu0 0.0
        %1254 = vmatpush1.msra.mxu0 0.0
        %1255 = vmatprep.subr.mxu0 0.0
        %1256 = vmatpush1.msra.mxu0 0.0
        %1257 = vmatprep.subr.mxu0 0.0
        %1258 = vmatpush1.msra.mxu0 0.0
        %1259 = vmatprep.subr.mxu0 0.0
        %1260 = vmatpush1.msra.mxu0 0.0
        %1261 = vmatprep.subr.mxu0 0.0
        %1262 = vmatpush1.msra.mxu0 0.0
        %1263 = vmatprep.subr.mxu0 0.0
        %1264 = vmatpush1.msra.mxu0 0.0
        %1265 = vmatprep.subr.mxu0 0.0
        %1266 = vmatpush1.msra.mxu0 0.0
        %1267 = vmatprep.subr.mxu0 0.0
        %1268 = vmatpush1.msra.mxu0 0.0
        %1269 = vmatprep.subr.mxu0 0.0
        %1270 = vmatpush1.msra.mxu0 0.0
        %1271 = vmatprep.subr.mxu0 0.0
        %1272 = vmatpush1.msra.mxu0 0.0
        %1273 = vmatprep.subr.mxu0 0.0
        %1274 = vmatpush1.msra.mxu0 0.0
        %1275 = vmatprep.subr.mxu0 0.0
        %1276 = vmatpush1.msra.mxu0 0.0
        %1277 = vmatprep.subr.mxu0 0.0
        %1278 = vmatpush1.msra.mxu0 0.0
        %1279 = vmatprep.subr.mxu0 0.0
        %1280 = vmatpush1.msra.mxu0 0.0
        %1281 = vmatprep.subr.mxu0 0.0
        %1282 = vmatpush1.msra.mxu0 0.0
        %1283 = vmatprep.subr.mxu0 0.0
        %1284 = vmatpush1.msra.mxu0 0.0
        %1285 = vmatprep.subr.mxu0 0.0
        %1286 = vmatpush1.msra.mxu0 0.0
        %1287 = vmatprep.subr.mxu0 0.0
        %1288 = vmatpush1.msra.mxu0 0.0
        %1289 = vmatprep.subr.mxu0 0.0
        %1290 = vmatpush1.msra.mxu0 0.0
        %1291 = vmatprep.subr.mxu0 0.0
        %1292 = vmatpush1.msra.mxu0 0.0
        %1293 = vmatprep.subr.mxu0 0.0
        %1294 = vmatpush1.msra.mxu0 0.0
        %1295 = vmatprep.subr.mxu0 0.0
        %1296 = vmatpush1.msra.mxu0 0.0
        %1297 = vmatprep.subr.mxu0 0.0
        %1298 = vmatpush1.msra.mxu0 0.0
        %1299 = vmatprep.mubr.f32.mxu0 0.0
        %1300 = vmatmul.mubr.f32.gmra.mrb[0].mxu0 %v873
        %v1301 = vpop.f32.mrb[0].mxu0
        %v1302 = vadd.f32 0.0, %v1301
        %v1303 = vpop.f32.mrb[0].mxu0
        %v1304 = vadd.f32 0.0, %v1303
        %1305 = vmatprep.mubr.f32.mxu0 0.0
        %1306 = vmatmul.mubr.f32.gmra.mrb[0].mxu0 %v876
        %v1307 = vpop.f32.mrb[0].mxu0
        %v1308 = vadd.f32 0.0, %v1307
        %v1309 = vpop.f32.mrb[0].mxu0
        %v1310 = vadd.f32 0.0, %v1309
        %1311 = vmatprep.mubr.f32.mxu0 0.0
        %1312 = vmatmul.mubr.f32.gmra.mrb[0].mxu0 %v879
        %v1313 = vpop.f32.mrb[0].mxu0
        %v1314 = vadd.f32 0.0, %v1313
        %v1315 = vpop.f32.mrb[0].mxu0
        %v1316 = vadd.f32 0.0, %v1315
        %1317 = vmatprep.mubr.f32.mxu0 0.0
        %1318 = vmatmul.mubr.f32.gmra.mrb[0].mxu0 %v882
        %v1319 = vpop.f32.mrb[0].mxu0
        %v1320 = vadd.f32 0.0, %v1319
        %v1321 = vpop.f32.mrb[0].mxu0
        %v1322 = vadd.f32 0.0, %v1321
        %1323 = vmatprep.mubr.f32.mxu0 0.0
        %1324 = vmatmul.mubr.f32.gmra.mrb[0].mxu0 %v885
        %v1325 = vpop.f32.mrb[0].mxu0
        %v1326 = vadd.f32 0.0, %v1325
        %v1327 = vpop.f32.mrb[0].mxu0
        %v1328 = vadd.f32 0.0, %v1327
        %1329 = vmatprep.mubr.f32.mxu0 0.0
        %1330 = vmatmul.mubr.f32.gmra.mrb[0].mxu0 %v888
        %v1331 = vpop.f32.mrb[0].mxu0
        %v1332 = vadd.f32 0.0, %v1331
        %v1333 = vpop.f32.mrb[0].mxu0
        %v1334 = vadd.f32 0.0, %v1333
        %1335 = vmatprep.mubr.f32.mxu0 0.0
        %1336 = vmatmul.mubr.f32.gmra.mrb[0].mxu0 %v891
        %v1337 = vpop.f32.mrb[0].mxu0
        %v1338 = vadd.f32 0.0, %v1337
        %v1339 = vpop.f32.mrb[0].mxu0
        %v1340 = vadd.f32 0.0, %v1339
        %1341 = vmatprep.mubr.f32.mxu0 0.0
        %1342 = vmatmul.mubr.f32.gmra.mrb[0].mxu0 %v894
        %v1343 = vpop.f32.mrb[0].mxu0
        %v1344 = vadd.f32 0.0, %v1343
        %v1345 = vpop.f32.mrb[0].mxu0
        %v1346 = vadd.f32 0.0, %v1345
        %1347 = vdwg.mxu0
        %v1348 = vmul.f32 %v446, %v963
        %v1349 = vmul.f32 %v448, %v965
        %v1350 = vmul.f32 %v559, %v1076
        %v1351 = vmul.f32 %v561, %v1078
        %v1352 = vmul.f32 %v672, %v1189
        %v1353 = vmul.f32 %v674, %v1191
        %v1354 = vmul.f32 %v785, %v1302
        %v1355 = vmul.f32 %v787, %v1304
        %v1356 = vmul.f32 %v452, %v969
        %v1357 = vmul.f32 %v454, %v971
        %v1358 = vmul.f32 %v565, %v1082
        %v1359 = vmul.f32 %v567, %v1084
        %v1360 = vmul.f32 %v678, %v1195
        %v1361 = vmul.f32 %v680, %v1197
        %v1362 = vmul.f32 %v791, %v1308
        %v1363 = vmul.f32 %v793, %v1310
        %v1364 = vmul.f32 %v458, %v975
        %v1365 = vmul.f32 %v460, %v977
        %v1366 = vmul.f32 %v571, %v1088
        %v1367 = vmul.f32 %v573, %v1090
        %v1368 = vmul.f32 %v684, %v1201
        %v1369 = vmul.f32 %v686, %v1203
        %v1370 = vmul.f32 %v797, %v1314
        %v1371 = vmul.f32 %v799, %v1316
        %v1372 = vmul.f32 %v464, %v981
        %v1373 = vmul.f32 %v466, %v983
        %v1374 = vmul.f32 %v577, %v1094
        %v1375 = vmul.f32 %v579, %v1096
        %v1376 = vmul.f32 %v690, %v1207
        %v1377 = vmul.f32 %v692, %v1209
        %v1378 = vmul.f32 %v803, %v1320
        %v1379 = vmul.f32 %v805, %v1322
        %v1380 = vmul.f32 %v470, %v987
        %v1381 = vmul.f32 %v472, %v989
        %v1382 = vmul.f32 %v583, %v1100
        %v1383 = vmul.f32 %v585, %v1102
        %v1384 = vmul.f32 %v696, %v1213
        %v1385 = vmul.f32 %v698, %v1215
        %v1386 = vmul.f32 %v809, %v1326
        %v1387 = vmul.f32 %v811, %v1328
        %v1388 = vmul.f32 %v476, %v993
        %v1389 = vmul.f32 %v478, %v995
        %v1390 = vmul.f32 %v589, %v1106
        %v1391 = vmul.f32 %v591, %v1108
        %v1392 = vmul.f32 %v702, %v1219
        %v1393 = vmul.f32 %v704, %v1221
        %v1394 = vmul.f32 %v815, %v1332
        %v1395 = vmul.f32 %v817, %v1334
        %v1396 = vmul.f32 %v482, %v999
        %v1397 = vmul.f32 %v484, %v1001
        %v1398 = vmul.f32 %v595, %v1112
        %v1399 = vmul.f32 %v597, %v1114
        %v1400 = vmul.f32 %v708, %v1225
        %v1401 = vmul.f32 %v710, %v1227
        %v1402 = vmul.f32 %v821, %v1338
        %v1403 = vmul.f32 %v823, %v1340
        %v1404 = vmul.f32 %v488, %v1005
        %v1405 = vmul.f32 %v490, %v1007
        %v1406 = vmul.f32 %v601, %v1118
        %v1407 = vmul.f32 %v603, %v1120
        %v1408 = vmul.f32 %v714, %v1231
        %v1409 = vmul.f32 %v716, %v1233
        %v1410 = vmul.f32 %v827, %v1344
        %v1411 = vmul.f32 %v829, %v1346
        %1412 = vst [vmem:[%s260] sm:$0xff] %v1348
        %1413 = vst [vmem:[%s260 + $0x8] sm:$0xff] %v1349
        %1414 = vst [vmem:[%s260 + $0x10] sm:$0xff] %v1350
        %1415 = vst [vmem:[%s260 + $0x18] sm:$0xff] %v1351
        %1416 = vst [vmem:[%s260 + $0x20] sm:$0xff] %v1352
        %1417 = vst [vmem:[%s260 + $0x28] sm:$0xff] %v1353
        %1418 = vst [vmem:[%s260 + $0x30] sm:$0xff] %v1354
        %1419 = vst [vmem:[%s260 + $0x38] sm:$0xff] %v1355
        %1420 = vst [vmem:[%s260 + $0x40] sm:$0xff] %v1356
        %1421 = vst [vmem:[%s260 + $0x48] sm:$0xff] %v1357
        %1422 = vst [vmem:[%s260 + $0x50] sm:$0xff] %v1358
        %1423 = vst [vmem:[%s260 + $0x58] sm:$0xff] %v1359
        %1424 = vst [vmem:[%s260 + $0x60] sm:$0xff] %v1360
        %1425 = vst [vmem:[%s260 + $0x68] sm:$0xff] %v1361
        %1426 = vst [vmem:[%s260 + $0x70] sm:$0xff] %v1362
        %1427 = vst [vmem:[%s260 + $0x78] sm:$0xff] %v1363
        %1428 = vst [vmem:[%s260 + $0x80] sm:$0xff] %v1364
        %1429 = vst [vmem:[%s260 + $0x88] sm:$0xff] %v1365
        %1430 = vst [vmem:[%s260 + $0x90] sm:$0xff] %v1366
        %1431 = vst [vmem:[%s260 + $0x98] sm:$0xff] %v1367
        %1432 = vst [vmem:[%s260 + $0xa0] sm:$0xff] %v1368
        %1433 = vst [vmem:[%s260 + $0xa8] sm:$0xff] %v1369
        %1434 = vst [vmem:[%s260 + $0xb0] sm:$0xff] %v1370
        %1435 = vst [vmem:[%s260 + $0xb8] sm:$0xff] %v1371
        %1436 = vst [vmem:[%s260 + $0xc0] sm:$0xff] %v1372
        %1437 = vst [vmem:[%s260 + $0xc8] sm:$0xff] %v1373
        %1438 = vst [vmem:[%s260 + $0xd0] sm:$0xff] %v1374
        %1439 = vst [vmem:[%s260 + $0xd8] sm:$0xff] %v1375
        %1440 = vst [vmem:[%s260 + $0xe0] sm:$0xff] %v1376
        %1441 = vst [vmem:[%s260 + $0xe8] sm:$0xff] %v1377
        %1442 = vst [vmem:[%s260 + $0xf0] sm:$0xff] %v1378
        %1443 = vst [vmem:[%s260 + $0xf8] sm:$0xff] %v1379
        %1444 = vst [vmem:[%s260 + $0x100] sm:$0xff] %v1380
        %1445 = vst [vmem:[%s260 + $0x108] sm:$0xff] %v1381
        %1446 = vst [vmem:[%s260 + $0x110] sm:$0xff] %v1382
        %1447 = vst [vmem:[%s260 + $0x118] sm:$0xff] %v1383
        %1448 = vst [vmem:[%s260 + $0x120] sm:$0xff] %v1384
        %1449 = vst [vmem:[%s260 + $0x128] sm:$0xff] %v1385
        %1450 = vst [vmem:[%s260 + $0x130] sm:$0xff] %v1386
        %1451 = vst [vmem:[%s260 + $0x138] sm:$0xff] %v1387
        %1452 = vst [vmem:[%s260 + $0x140] sm:$0xff] %v1388
        %1453 = vst [vmem:[%s260 + $0x148] sm:$0xff] %v1389
        %1454 = vst [vmem:[%s260 + $0x150] sm:$0xff] %v1390
        %1455 = vst [vmem:[%s260 + $0x158] sm:$0xff] %v1391
        %1456 = vst [vmem:[%s260 + $0x160] sm:$0xff] %v1392
        %1457 = vst [vmem:[%s260 + $0x168] sm:$0xff] %v1393
        %1458 = vst [vmem:[%s260 + $0x170] sm:$0xff] %v1394
        %1459 = vst [vmem:[%s260 + $0x178] sm:$0xff] %v1395
        %1460 = vst [vmem:[%s260 + $0x180] sm:$0xff] %v1396
        %1461 = vst [vmem:[%s260 + $0x188] sm:$0xff] %v1397
        %1462 = vst [vmem:[%s260 + $0x190] sm:$0xff] %v1398
        %1463 = vst [vmem:[%s260 + $0x198] sm:$0xff] %v1399
        %1464 = vst [vmem:[%s260 + $0x1a0] sm:$0xff] %v1400
        %1465 = vst [vmem:[%s260 + $0x1a8] sm:$0xff] %v1401
        %1466 = vst [vmem:[%s260 + $0x1b0] sm:$0xff] %v1402
        %1467 = vst [vmem:[%s260 + $0x1b8] sm:$0xff] %v1403
        %1468 = vst [vmem:[%s260 + $0x1c0] sm:$0xff] %v1404
        %1469 = vst [vmem:[%s260 + $0x1c8] sm:$0xff] %v1405
        %1470 = vst [vmem:[%s260 + $0x1d0] sm:$0xff] %v1406
        %1471 = vst [vmem:[%s260 + $0x1d8] sm:$0xff] %v1407
        %1472 = vst [vmem:[%s260 + $0x1e0] sm:$0xff] %v1408
        %1473 = vst [vmem:[%s260 + $0x1e8] sm:$0xff] %v1409
        %1474 = vst [vmem:[%s260 + $0x1f0] sm:$0xff] %v1410
        %1475 = vst [vmem:[%s260 + $0x1f8] sm:$0xff] %v1411
        %s1476 = sand.u32 %s145, 1
        %s1477 = scalar_lea.sflag [#allocation4], %s1476
        %s1478 = sand.u32 %s145, 1
        %s1479 = smul.addr %s1478, 512
        %s1480 = scalar_lea.vmem [#allocation5], %s1479
        // Predicated region
        $region41: #{tpu_custom_call.1} parent=35 // pred_check
          %p1481 = pneg %p155
        $region42: #{tpu_custom_call.1} parent=35 // pred_check_branch
          %1483 = sbr.rel (%p1481) target = $region44
        $region43: #{tpu_custom_call.1} parent=35 // pred_region
          %s1484 = smul.u32 8, %s24
          %s1485 = smul.u32 8, %s23
          %s1487 = ssub.s32 8192, 8192
          %1488 = vsyncadd %s1477, %s1487
          %s1489 = smul.addr %s1484, 8
          %s1490 = sadd.s32 %s1485, %s1489
          %s1491 = smul.addr %s1490, 128
          %s1492 = scalar_lea.hbm %s4, %s1491
          %s1493 = sshll.u32 %s1480, 4
          %s1494 = int_to_ptr.vmem [resolvable:$true] %s1493
          %1499 = dma.vmem_to_hbm [thread:$0]  %s1494, 8192, %s1492, %s1477, 1024, 1024, 64
        $region44: #{tpu_custom_call.1} parent=35 // pred_fallthru
          _
      $region36: #{tpu_custom_call.1} parent=5 // pred_fallthru
        _
      %p1500 = scmp.le.s32.totalorder 2, %s14
      // Predicated region
      $region45: #{tpu_custom_call.1} parent=5 // pred_check
        %p1501 = pneg %p1500
      $region46: #{tpu_custom_call.1} parent=5 // pred_check_branch
        %1503 = sbr.rel (%p1501) target = $region48
      $region47: #{tpu_custom_call.1} parent=5 // pred_region
        %s1504 = ssub.s32 %s14, 2
        // Predicated region
        $region49: #{tpu_custom_call.1} parent=47 // pred_check
          %p1505 = pneg %p161
        $region50: #{tpu_custom_call.1} parent=47 // pred_check_branch
          %1507 = sbr.rel (%p1505) target = $region52
        $region51: #{tpu_custom_call.1} parent=47 // pred_region
          %s1508 = sand.u32 %s146, 1
          %s1509 = scalar_lea.sflag [#allocation4], %s1508
          %s1510 = sand.u32 %s146, 1
          %s1511 = smul.addr %s1510, 512
          %s1512 = scalar_lea.vmem [#allocation5], %s1511
          %1513 = dma.done %s1509, 8192
        $region52: #{tpu_custom_call.1} parent=47 // pred_fallthru
          _
      $region48: #{tpu_custom_call.1} parent=5 // pred_fallthru
        _
    $region6: #{tpu_custom_call.1} parent=1 // loop_footer
      %s18 = sadd.s32 1, %s14
    $region7: #{tpu_custom_call.1} parent=1 // loop_footer_branch
      %13 = sbr.rel target = $region3
    $region8: #{tpu_custom_call.1} parent=1 // loop_exit
      _
    %1514 = vsyncpa [#allocation3], 1
    %s1515 = scalar_lea.sflag [#allocation3], 1
    %1516 = vsyncpa %s1515, 1
    %1517 = vsyncpa [#allocation4], 1
    %s1518 = scalar_lea.sflag [#allocation4], 1
    %1519 = vsyncpa %s1518, 1

</llo_original>
